<compile_context>
chip_gen: v5e
topology: v5e:2x2
jax: 0.10.0
libtpu: 0.0.40
codegen_flags: <defaults>
</compile_context>

<pallas_src>
import functools
import math

import jax
import jax.numpy as jnp
from jax import lax
from jax.experimental import pallas as pl
from jax.experimental.pallas import tpu as pltpu


def _field_conv_kernel(mask_ref,      # SMEM (B*Mt*Nt,) int32, scalar-prefetched
                       centers_ref,   # (1, 3, TM)  scaled centers, transposed
                       drow_ref,      # (S, 3, TM)  scaled sample offsets (lane-replicated)
                       points_ref,    # (1, TN, 4)  raw [x, y, z, sdf]
                       filt_ref,      # (C_out, S)
                       bias_ref,      # (C_out, 1)
                       out_ref,       # (1, C_out, TM)
                       acc_ref,       # VMEM (2, S*TM) f32: rows [sum w*sdf, sum w]
                       *, coord_scale, n_samples, tile_m, mt, nt):
    b = pl.program_id(0)
    i = pl.program_id(1)
    k = pl.program_id(2)

    @pl.when(k == 0)
    def _init():
        acc_ref[...] = jnp.zeros_like(acc_ref)

    # Bounding-box early-out: skip point tiles outside the Gaussian support of
    # this center tile (precomputed mask in SMEM).
    hit = mask_ref[(b * mt + i) * nt + k] > 0

    @pl.when(hit)
    def _accumulate():
        pts = points_ref[0]                                   # (TN, 4)
        x0 = pts[:, 0:1] * coord_scale                        # (TN, 1)
        x1 = pts[:, 1:2] * coord_scale
        x2 = pts[:, 2:3] * coord_scale
        sdf = pts[:, 3:4]
        srhs = jnp.concatenate([sdf, jnp.ones_like(sdf)], axis=1)   # (TN, 2)

        # Exact-f32 base differences (point - center), hoisted out of the
        # sample loop so the column lane-broadcast happens once per step.
        bd0 = x0 - centers_ref[0, 0:1, :]                     # (TN, TM)
        bd1 = x1 - centers_ref[0, 1:2, :]
        bd2 = x2 - centers_ref[0, 2:3, :]

        @pl.loop(0, n_samples)
        def _per_sample(s):
            dr = drow_ref[s]                                  # (3, TM)
            e0 = bd0 - dr[0:1, :]
            e1 = bd1 - dr[1:2, :]
            e2 = bd2 - dr[2:3, :]
            # Gaussian weights; cancellation-free, exact-f32 argument.
            w = jnp.exp(-(e0 * e0 + e1 * e1 + e2 * e2))       # (TN, TM)
            # Point-axis reduction on the MXU: rows = [sum w*sdf, sum w].
            # f32 inputs at DEFAULT precision (1-pass bf16 is plenty here;
            # use Precision.HIGH for closer f32 parity if ever needed).
            red = lax.dot_general(
                srhs, w, (((0,), (0,)), ((), ())),
                preferred_element_type=jnp.float32)           # (2, TM)
            off = pl.multiple_of(s * tile_m, tile_m)
            acc_ref[:, pl.ds(off, tile_m)] += red

    @pl.when(k == nt - 1)
    def _finalize():
        num = acc_ref[0:1, :]                                 # (1, S*TM)
        den = acc_ref[1:2, :]
        field = num * pl.reciprocal(den + 1e-12, approx=True)  # (1, S*TM)
        field = field.reshape(n_samples, tile_m)              # (S, TM)
        # Tiny projection (C_out, S) x (S, TM) once per center tile; HIGHEST
        # is negligible cost here and keeps the learned-filter path accurate.
        proj = jnp.dot(filt_ref[...], field,
                       precision=lax.Precision.HIGHEST,
                       preferred_element_type=jnp.float32)     # (C_out, TM)
        out_ref[0] = (proj + bias_ref[...]).astype(out_ref.dtype)


def _part1by2(v):
    v = v & 0x3FF
    v = (v | (v << 16)) & 0x030000FF
    v = (v | (v << 8)) & 0x0300F00F
    v = (v | (v << 4)) & 0x030C30C3
    v = (v | (v << 2)) & 0x09249249
    return v


def _morton_sort(points_sdf):
    """Z-order (Morton) sort of the point cloud along axis 1.

    The interpolation sums over all points, so reordering is value-preserving;
    it makes point-tile bounding boxes compact so the tile-pair cull works.
    """
    xyz = points_sdf[..., :3]
    lo = xyz.min(axis=1, keepdims=True)
    hi = xyz.max(axis=1, keepdims=True)
    q = (xyz - lo) / jnp.maximum(hi - lo, 1e-12) * 1023.0
    q = jnp.clip(q, 0.0, 1023.0).astype(jnp.uint32)
    code = (_part1by2(q[..., 0])
            | (_part1by2(q[..., 1]) << 1)
            | (_part1by2(q[..., 2]) << 2))
    order = jnp.argsort(code, axis=1)
    return jnp.take_along_axis(points_sdf, order[..., None], axis=1)


def field_conv(points_sdf, deltas, weight, bias, *, edge_length, center_number,
               tile_m=128, tile_n=512, gauss_cutoff=90.0, spatial_sort=True):
    """FieldConv forward.

    Args:
      points_sdf: (B, N, 4) float32, columns [x, y, z, sdf].
      deltas:     (S, 3) filter sample offsets in [-1, 1]^3 (scaled by
                  edge_length here).
      weight:     (C_out, C_in=1, S) conv-style filter weights.
      bias:       (C_out,).
    Returns:
      (B, C_out, center_number) float32 (channel-first, like a torch conv).
    """
    B, N, four = points_sdf.shape
    assert four == 4, "points_sdf must be (B, N, 4) = [xyz, sdf]"
    M = int(center_number)
    C_out, C_in, S = weight.shape
    assert C_in == 1, "feature_is_sdf=True implies in_channels == 1"
    assert M <= N

    tile_m = min(int(tile_m), M)
    tile_n = min(int(tile_n), N)
    assert M % tile_m == 0 and N % tile_n == 0
    assert (tile_m % 128 == 0) or (tile_m == M)
    assert (tile_n % 8 == 0) or (tile_n == N)
    mt, nt = M // tile_m, N // tile_n

    f32 = jnp.float32
    points_sdf = points_sdf.astype(f32)
    deltas = deltas.astype(f32)
    scale = 1.0 / (math.sqrt(2.0) * float(edge_length))   # folds 1/(2 sigma^2)

    # Centers are the first M points of the ORIGINAL ordering.
    centers_raw = points_sdf[:, :M, :3]                        # (B, M, 3)
    centers_t = jnp.swapaxes(centers_raw, 1, 2) * scale        # (B, 3, M)

    # Scaled per-sample offsets, replicated across the lane (center) dim so the
    # kernel reads them with leading-dim dynamic indexing as (1, TM) rows.
    deltas_scaled = deltas * (float(edge_length) * scale)      # (S, 3)
    deltas_rows = jnp.broadcast_to(deltas_scaled[:, :, None], (S, 3, tile_m))

    # Spatially sort the interpolation source points (order-invariant sum).
    pts = _morton_sort(points_sdf) if spatial_sort else points_sdf

    # ---- tile-pair visibility mask (scalar prefetch) ------------------------
    pts3 = pts[..., :3].reshape(B, nt, tile_n, 3)
    pmin = pts3.min(axis=2) * scale                            # (B, Nt, 3)
    pmax = pts3.max(axis=2) * scale
    cpts = centers_raw.reshape(B, mt, tile_m, 3)
    off_r = jnp.max(jnp.abs(deltas), axis=0) * float(edge_length)  # (3,)
    cmin = (cpts.min(axis=2) - off_r) * scale                  # (B, Mt, 3)
    cmax = (cpts.max(axis=2) + off_r) * scale
    gap = jnp.maximum(
        jnp.maximum(pmin[:, None, :, :] - cmax[:, :, None, :],
                    cmin[:, :, None, :] - pmax[:, None, :, :]), 0.0)
    gap2 = jnp.sum(gap * gap, axis=-1)                         # (B, Mt, Nt)
    # exp(-gap2) underflows beyond the cutoff -> skipping == computing.
    mask = (gap2 < float(gauss_cutoff)).astype(jnp.int32).reshape(-1)

    filt = weight.reshape(C_out, S).astype(f32)                # (C_out, S)
    bias2 = bias.reshape(C_out, 1).astype(f32)                 # (C_out, 1)

    kernel = functools.partial(
        _field_conv_kernel, coord_scale=scale, n_samples=S,
        tile_m=tile_m, mt=mt, nt=nt)

    # TODO(synk): at production sizes the dense (mt, nt) grid still pays the
    # per-step overhead for culled tiles; compacting the k axis to a
    # scalar-prefetched per-(b, i) hit list needs a host-visible max-hit count
    # (dynamic grid), so it is not done here.
    out = pl.pallas_call(
        kernel,
        out_shape=jax.ShapeDtypeStruct((B, C_out, M), f32),
        grid_spec=pltpu.PrefetchScalarGridSpec(
            num_scalar_prefetch=1,
            grid=(B, mt, nt),
            in_specs=[
                # scaled, transposed centers for this center tile
                pl.BlockSpec((1, 3, tile_m), lambda b, i, k, *_: (b, 0, i)),
                # per-sample offset rows (grid-constant, stays resident)
                pl.BlockSpec((S, 3, tile_m), lambda b, i, k, *_: (0, 0, 0)),
                # native point blocks [x, y, z, sdf]
                pl.BlockSpec((1, tile_n, 4), lambda b, i, k, *_: (b, k, 0)),
                pl.BlockSpec((C_out, S), lambda b, i, k, *_: (0, 0)),
                pl.BlockSpec((C_out, 1), lambda b, i, k, *_: (0, 0)),
            ],
            # channel-first, lane-dense output block
            out_specs=pl.BlockSpec((1, C_out, tile_m),
                                   lambda b, i, k, *_: (b, 0, i)),
            scratch_shapes=[
                pltpu.VMEM((2, S * tile_m), jnp.float32),   # [num; den] accumulators
            ],
        ),
        compiler_params=pltpu.CompilerParams(
            dimension_semantics=("parallel", "parallel", "arbitrary"),
            vmem_limit_bytes=32 * 1024 * 1024),
    )(mask, centers_t, deltas_rows, pts, filt, bias2)

    return out   # (B, C_out, M)


_field_conv_jit = jax.jit(
    field_conv,
    static_argnames=("edge_length", "center_number", "tile_m", "tile_n",
                     "gauss_cutoff", "spatial_sort"))


class Net:
    """JAX/Pallas port of the torch `Net` (a single FieldConv layer)."""

    def __init__(self, key, *, edge_length=0.01, filter_sample_number=32,
                 center_number=4096, in_channels=1, out_channels=32):
        self.edge_length = float(edge_length)
        self.center_number = int(center_number)
        k_w, k_d = jax.random.split(key)
        fan_in = in_channels * filter_sample_number
        # Conv-style weight: (out_channels, in_channels, filter_sample_number)
        self.weight = (jax.random.normal(
            k_w, (out_channels, in_channels, filter_sample_number), jnp.float32)
            / jnp.sqrt(jnp.float32(fan_in)))
        self.bias = jnp.zeros((out_channels,), jnp.float32)
        # TODO(synk): original FieldConv's sample-offset scheme is unknown;
        # deterministic offsets sampled uniformly in [-1, 1]^3, scaled by
        # edge_length inside field_conv.
        self.deltas = jax.random.uniform(
            k_d, (filter_sample_number, 3), jnp.float32, -1.0, 1.0)

    def forward(self, batch):
        out = _field_conv_jit(batch["points_sdf"], self.deltas, self.weight,
                              self.bias,
                              edge_length=self.edge_length,
                              center_number=self.center_number)
        print(out.shape)   # mirrors the torch forward's `print(out.shape)`
        # torch forward returns None; we return the tensor so the caller can
        # block on it.
        return out


if __name__ == "__main__":
    key = jax.random.PRNGKey(0)
    k_pts, k_sdf, k_params = jax.random.split(key, 3)

    # Small shapes for the demo (original module uses center_number=4096).
    B, N = 2, 1024
    center_number = 256

    xyz = jax.random.uniform(k_pts, (B, N, 3), jnp.float32, -0.5, 0.5)
    sdf = 0.1 * jax.random.normal(k_sdf, (B, N, 1), jnp.float32)
    points_sdf = jnp.concatenate([xyz, sdf], axis=-1)   # (B, N, 4)

    net = Net(k_params, edge_length=0.01, filter_sample_number=32,
              center_number=center_number, in_channels=1, out_channels=32)

    out = net.forward({"points_sdf": points_sdf})
    jax.block_until_ready(out)
    assert out.shape == (B, 32, center_number)
    assert bool(jnp.all(jnp.isfinite(out)))
    print("KERNEL_OK")
</pallas_src>

<mosaic_0001>
module attributes {stable_mosaic.version = 11 : i64} {
  func.func @_field_conv_kernel(%arg0: i32, %arg1: i32, %arg2: i32, %arg3: memref<8xi32, #tpu.memory_space<smem>>, %arg4: memref<1x3x128xf32, #tpu.memory_space<vmem>>, %arg5: memref<32x3x128xf32, #tpu.memory_space<vmem>>, %arg6: memref<1x512x4xf32, #tpu.memory_space<vmem>>, %arg7: memref<32x32xf32, #tpu.memory_space<vmem>>, %arg8: memref<32x1xf32, #tpu.memory_space<vmem>>, %arg9: memref<1x32x128xf32, #tpu.memory_space<vmem>>, %arg10: memref<2x4096xf32, #tpu.memory_space<vmem>>) attributes {dimension_semantics = [#tpu.dimension_semantics<parallel>, #tpu.dimension_semantics<parallel>, #tpu.dimension_semantics<arbitrary>], iteration_bounds = array<i64: 2, 2, 2>, scalar_prefetch = 1 : i64, scratch_operands = 1 : i64, tpu.core_type = #tpu.core_type<tc>, window_params = [{transform_indices = @transform_0, window_bounds = array<i64: 1, 3, 128>}, {pipeline_mode = #tpu.pipeline_mode<synchronous>, transform_indices = @transform_1, window_bounds = array<i64: 32, 3, 128>}, {transform_indices = @transform_2, window_bounds = array<i64: 1, 512, 4>}, {pipeline_mode = #tpu.pipeline_mode<synchronous>, transform_indices = @transform_3, window_bounds = array<i64: 32, 32>}, {pipeline_mode = #tpu.pipeline_mode<synchronous>, transform_indices = @transform_4, window_bounds = array<i64: 32, 1>}, {transform_indices = @transform_5, window_bounds = array<i64: 1, 32, 128>}]} {
    %c0_i32 = arith.constant 0 : i32
    %0 = arith.cmpi eq, %arg2, %c0_i32 : i32
    %1 = arith.extui %0 : i1 to i32
    %c0_i32_0 = arith.constant 0 : i32
    %2 = arith.cmpi ne, %1, %c0_i32_0 : i32
    scf.if %2 {
      %cst = arith.constant 0.000000e+00 : f32
      %15 = vector.broadcast %cst : f32 to vector<2x4096xf32>
      %c0 = arith.constant 0 : index
      %c0_5 = arith.constant 0 : index
      %16 = vector.load %arg10[%c0, %c0_5] : memref<2x4096xf32, #tpu.memory_space<vmem>>, vector<2x4096xf32>
      tpu.vector_store %arg10[%c0, %c0_5], %15 {strides = array<i32>} : memref<2x4096xf32, #tpu.memory_space<vmem>>, vector<2x4096xf32>,
    } else {
    }
    %c2_i32 = arith.constant 2 : i32
    %3 = arith.muli %arg0, %c2_i32 : i32
    %4 = arith.addi %3, %arg1 : i32
    %c2_i32_1 = arith.constant 2 : i32
    %5 = arith.muli %4, %c2_i32_1 : i32
    %6 = arith.addi %5, %arg2 : i32
    %7 = arith.index_cast %6 : i32 to index
    %8 = memref.load %arg3[%7] : memref<8xi32, #tpu.memory_space<smem>>
    %c0_i32_2 = arith.constant 0 : i32
    %9 = arith.cmpi sgt, %8, %c0_i32_2 : i32
    %10 = arith.extui %9 : i1 to i32
    %c0_i32_3 = arith.constant 0 : i32
    %11 = arith.cmpi ne, %10, %c0_i32_3 : i32
    scf.if %11 {
      %c0 = arith.constant 0 : index
      %c0_5 = arith.constant 0 : index
      %c0_6 = arith.constant 0 : index
      %15 = vector.load %arg6[%c0, %c0_5, %c0_6] : memref<1x512x4xf32, #tpu.memory_space<vmem>>, vector<1x512x4xf32>
      %16 = vector.shape_cast %15 : vector<1x512x4xf32> to vector<512x4xf32>
      %17 = vector.extract_strided_slice %16 {offsets = [0, 0], sizes = [512, 1], strides = [1, 1]} : vector<512x4xf32> to vector<512x1xf32>
      %cst = arith.constant 70.7106781 : f32
      %18 = vector.broadcast %cst : f32 to vector<512x1xf32>
      %19 = arith.mulf %17, %18 : vector<512x1xf32>
      %20 = vector.extract_strided_slice %16 {offsets = [0, 1], sizes = [512, 1], strides = [1, 1]} : vector<512x4xf32> to vector<512x1xf32>
      %cst_7 = arith.constant 70.7106781 : f32
      %21 = vector.broadcast %cst_7 : f32 to vector<512x1xf32>
      %22 = arith.mulf %20, %21 : vector<512x1xf32>
      %23 = vector.extract_strided_slice %16 {offsets = [0, 2], sizes = [512, 1], strides = [1, 1]} : vector<512x4xf32> to vector<512x1xf32>
      %cst_8 = arith.constant 70.7106781 : f32
      %24 = vector.broadcast %cst_8 : f32 to vector<512x1xf32>
      %25 = arith.mulf %23, %24 : vector<512x1xf32>
      %26 = vector.extract_strided_slice %16 {offsets = [0, 3], sizes = [512, 1], strides = [1, 1]} : vector<512x4xf32> to vector<512x1xf32>
      %cst_9 = arith.constant 1.000000e+00 : f32
      %27 = vector.broadcast %cst_9 : f32 to vector<512x1xf32>
      %28 = tpu.concatenate %26, %27 in 1 : vector<512x1xf32>, vector<512x1xf32> -> vector<512x2xf32>
      %c0_10 = arith.constant 0 : index
      %c0_11 = arith.constant 0 : index
      %c0_12 = arith.constant 0 : index
      %29 = vector.load %arg4[%c0_10, %c0_11, %c0_12] : memref<1x3x128xf32, #tpu.memory_space<vmem>>, vector<1x1x128xf32>
      %30 = vector.shape_cast %29 : vector<1x1x128xf32> to vector<1x128xf32>
      %31 = vector.broadcast %19 : vector<512x1xf32> to vector<512x128xf32>
      %32 = vector.broadcast %30 : vector<1x128xf32> to vector<512x128xf32>
      %33 = arith.subf %31, %32 : vector<512x128xf32>
      %c0_13 = arith.constant 0 : index
      %c1 = arith.constant 1 : index
      %c0_14 = arith.constant 0 : index
      %34 = vector.load %arg4[%c0_13, %c1, %c0_14] : memref<1x3x128xf32, #tpu.memory_space<vmem>>, vector<1x1x128xf32>
      %35 = vector.shape_cast %34 : vector<1x1x128xf32> to vector<1x128xf32>
      %36 = vector.broadcast %22 : vector<512x1xf32> to vector<512x128xf32>
      %37 = vector.broadcast %35 : vector<1x128xf32> to vector<512x128xf32>
      %38 = arith.subf %36, %37 : vector<512x128xf32>
      %c0_15 = arith.constant 0 : index
      %c2 = arith.constant 2 : index
      %c0_16 = arith.constant 0 : index
      %39 = vector.load %arg4[%c0_15, %c2, %c0_16] : memref<1x3x128xf32, #tpu.memory_space<vmem>>, vector<1x1x128xf32>
      %40 = vector.shape_cast %39 : vector<1x1x128xf32> to vector<1x128xf32>
      %41 = vector.broadcast %25 : vector<512x1xf32> to vector<512x128xf32>
      %42 = vector.broadcast %40 : vector<1x128xf32> to vector<512x128xf32>
      %43 = arith.subf %41, %42 : vector<512x128xf32>
      %c0_i32_17 = arith.constant 0 : i32
      %c32_i32 = arith.constant 32 : i32
      %44 = arith.addi %c0_i32_17, %c32_i32 : i32
      %c1_i32_18 = arith.constant 1 : i32
      scf.for %arg11 = %c0_i32_17 to %44 step %c1_i32_18  : i32 {
        %c1_i32_20 = arith.constant 1 : i32
        %45 = arith.muli %arg11, %c1_i32_20 : i32
        %c0_i32_21 = arith.constant 0 : i32
        %46 = arith.addi %c0_i32_21, %45 : i32
        %47 = arith.index_cast %46 : i32 to index
        %c0_22 = arith.constant 0 : index
        %c0_23 = arith.constant 0 : index
        %48 = vector.load %arg5[%47, %c0_22, %c0_23] : memref<32x3x128xf32, #tpu.memory_space<vmem>>, vector<1x3x128xf32>
        %49 = vector.shape_cast %48 : vector<1x3x128xf32> to vector<3x128xf32>
        %50 = vector.extract_strided_slice %49 {offsets = [0, 0], sizes = [1, 128], strides = [1, 1]} : vector<3x128xf32> to vector<1x128xf32>
        %51 = vector.broadcast %50 : vector<1x128xf32> to vector<512x128xf32>
        %52 = arith.subf %33, %51 : vector<512x128xf32>
        %53 = vector.extract_strided_slice %49 {offsets = [1, 0], sizes = [1, 128], strides = [1, 1]} : vector<3x128xf32> to vector<1x128xf32>
        %54 = vector.broadcast %53 : vector<1x128xf32> to vector<512x128xf32>
        %55 = arith.subf %38, %54 : vector<512x128xf32>
        %56 = vector.extract_strided_slice %49 {offsets = [2, 0], sizes = [1, 128], strides = [1, 1]} : vector<3x128xf32> to vector<1x128xf32>
        %57 = vector.broadcast %56 : vector<1x128xf32> to vector<512x128xf32>
        %58 = arith.subf %43, %57 : vector<512x128xf32>
        %59 = arith.mulf %52, %52 : vector<512x128xf32>
        %60 = arith.mulf %55, %55 : vector<512x128xf32>
        %61 = arith.addf %59, %60 : vector<512x128xf32>
        %62 = arith.mulf %58, %58 : vector<512x128xf32>
        %63 = arith.addf %61, %62 : vector<512x128xf32>
        %cst_24 = arith.constant 0.000000e+00 : f32
        %64 = vector.broadcast %cst_24 : f32 to vector<512x128xf32>
        %65 = arith.subf %64, %63 : vector<512x128xf32>
        %66 = math.exp %65 : vector<512x128xf32>
        %cst_25 = arith.constant dense<0.000000e+00> : vector<2x128xf32>
        %67 = tpu.matmul %28, %66, %cst_25 {dimension_numbers = #tpu.dot_dimension_numbers<[0], [0], [1], [1], [0, 1, 1, 1], [], []>} : vector<512x2xf32>, vector<512x128xf32>, vector<2x128xf32> -> vector<2x128xf32>
        %c128_i32 = arith.constant 128 : i32
        %68 = arith.muli %46, %c128_i32 : i32
        %69 = tpu.assume_multiple %68, 128 : i32
        %c0_26 = arith.constant 0 : index
        %70 = arith.index_cast %69 : i32 to index
        %71 = vector.load %arg10[%c0_26, %70] : memref<2x4096xf32, #tpu.memory_space<vmem>>, vector<2x128xf32>
        %72 = arith.addf %71, %67 : vector<2x128xf32>
        %c0_27 = arith.constant 0 : index
        %73 = arith.index_cast %69 : i32 to index
        %74 = vector.load %arg10[%c0_27, %73] : memref<2x4096xf32, #tpu.memory_space<vmem>>, vector<2x128xf32>
        tpu.vector_store %arg10[%c0_27, %73], %72 {strides = array<i32>} : memref<2x4096xf32, #tpu.memory_space<vmem>>, vector<2x128xf32>,
      }
      %c32_i32_19 = arith.constant 32 : i32
    } else {
    }
    %c1_i32 = arith.constant 1 : i32
    %12 = arith.cmpi eq, %arg2, %c1_i32 : i32
    %13 = arith.extui %12 : i1 to i32
    %c0_i32_4 = arith.constant 0 : i32
    %14 = arith.cmpi ne, %13, %c0_i32_4 : i32
    scf.if %14 {
      %c0 = arith.constant 0 : index
      %c0_5 = arith.constant 0 : index
      %15 = vector.load %arg10[%c0, %c0_5] : memref<2x4096xf32, #tpu.memory_space<vmem>>, vector<1x4096xf32>
      %c1 = arith.constant 1 : index
      %c0_6 = arith.constant 0 : index
      %16 = vector.load %arg10[%c1, %c0_6] : memref<2x4096xf32, #tpu.memory_space<vmem>>, vector<1x4096xf32>
      %cst = arith.constant 9.99999996E-13 : f32
      %17 = vector.broadcast %cst : f32 to vector<1x4096xf32>
      %18 = arith.addf %16, %17 : vector<1x4096xf32>
      %19 = tpu.reciprocal %18 {approx = true} : vector<1x4096xf32> -> vector<1x4096xf32>
      %20 = arith.mulf %15, %19 : vector<1x4096xf32>
      %21 = vector.shape_cast %20 : vector<1x4096xf32> to vector<32x128xf32>
      %c0_7 = arith.constant 0 : index
      %c0_8 = arith.constant 0 : index
      %22 = vector.load %arg7[%c0_7, %c0_8] : memref<32x32xf32, #tpu.memory_space<vmem>>, vector<32x32xf32>
      %cst_9 = arith.constant dense<0.000000e+00> : vector<32x128xf32>
      %23 = tpu.matmul %22, %21, %cst_9 {dimension_numbers = #tpu.dot_dimension_numbers<[1], [0], [0], [1], [0, 0, 1, 1], [], []>, precision = #tpu.contract_precision<fp32>} : vector<32x32xf32>, vector<32x128xf32>, vector<32x128xf32> -> vector<32x128xf32>
      %c0_10 = arith.constant 0 : index
      %c0_11 = arith.constant 0 : index
      %24 = vector.load %arg8[%c0_10, %c0_11] : memref<32x1xf32, #tpu.memory_space<vmem>>, vector<32x1xf32>
      %25 = vector.broadcast %24 : vector<32x1xf32> to vector<32x128xf32>
      %26 = arith.addf %23, %25 : vector<32x128xf32>
      %c0_12 = arith.constant 0 : index
      %c0_13 = arith.constant 0 : index
      %c0_14 = arith.constant 0 : index
      %27 = vector.load %arg9[%c0_12, %c0_13, %c0_14] : memref<1x32x128xf32, #tpu.memory_space<vmem>>, vector<1x32x128xf32>
      %28 = vector.shape_cast %27 : vector<1x32x128xf32> to vector<32x128xf32>
      %29 = vector.shape_cast %26 : vector<32x128xf32> to vector<1x32x128xf32>
      tpu.vector_store %arg9[%c0_12, %c0_13, %c0_14], %29 {strides = array<i32>} : memref<1x32x128xf32, #tpu.memory_space<vmem>>, vector<1x32x128xf32>,
    } else {
    }
    return
  }
  func.func @transform_0(%arg0: i32, %arg1: i32, %arg2: i32, %arg3: memref<8xi32, #tpu.memory_space<smem>>) -> (i32, i32, i32) {
    %c0_i32 = arith.constant 0 : i32
    %c0_i32_0 = arith.constant 0 : i32
    return %arg0, %c0_i32, %arg1 : i32, i32, i32
  }
  func.func @transform_1(%arg0: i32, %arg1: i32, %arg2: i32, %arg3: memref<8xi32, #tpu.memory_space<smem>>) -> (i32, i32, i32) {
    %c0_i32 = arith.constant 0 : i32
    %c0_i32_0 = arith.constant 0 : i32
    %c0_i32_1 = arith.constant 0 : i32
    %c0_i32_2 = arith.constant 0 : i32
    return %c0_i32, %c0_i32_0, %c0_i32_1 : i32, i32, i32
  }
  func.func @transform_2(%arg0: i32, %arg1: i32, %arg2: i32, %arg3: memref<8xi32, #tpu.memory_space<smem>>) -> (i32, i32, i32) {
    %c0_i32 = arith.constant 0 : i32
    %c0_i32_0 = arith.constant 0 : i32
    return %arg0, %arg2, %c0_i32 : i32, i32, i32
  }
  func.func @transform_3(%arg0: i32, %arg1: i32, %arg2: i32, %arg3: memref<8xi32, #tpu.memory_space<smem>>) -> (i32, i32) {
    %c0_i32 = arith.constant 0 : i32
    %c0_i32_0 = arith.constant 0 : i32
    %c0_i32_1 = arith.constant 0 : i32
    return %c0_i32, %c0_i32_0 : i32, i32
  }
  func.func @transform_4(%arg0: i32, %arg1: i32, %arg2: i32, %arg3: memref<8xi32, #tpu.memory_space<smem>>) -> (i32, i32) {
    %c0_i32 = arith.constant 0 : i32
    %c0_i32_0 = arith.constant 0 : i32
    %c0_i32_1 = arith.constant 0 : i32
    return %c0_i32, %c0_i32_0 : i32, i32
  }
  func.func @transform_5(%arg0: i32, %arg1: i32, %arg2: i32, %arg3: memref<8xi32, #tpu.memory_space<smem>>) -> (i32, i32, i32) {
    %c0_i32 = arith.constant 0 : i32
    %c0_i32_0 = arith.constant 0 : i32
    return %arg0, %c0_i32, %arg1 : i32, i32, i32
  }
}

</mosaic_0001>

<llo_original>
// kernel: field_conv.1
$region0: #{field_conv.1}
  #allocation0 [shape = 'u32[]', space=smem, size = 0x4, offset = 0x4, fixed_abs, tag = 'smem constant byte address 0x4 - core index']
  #allocation1 [shape = 'u32[72,128]{1,0:T(1,128)}', space=vmem, size = 0x9000, scoped, tag = 'internal scratch']
  #allocation2 [shape = 'f32[2,4096]{1,0:T(2,128)}', space=vmem, size = 0x8000, scoped, tag = 'scratch operand']
  #allocation3 [shape = 's32[1]{0}', space=sflag, size = 0x4, scoped, tag = 'scoped memory for field_conv.1']
  #allocation4 [shape = 'u8[512]{0}', space=smem, size = 0x200, scoped, tag = 'prefetched SMEM operand 0']
  %s0 = inlined_call_operand.vmem [shape: s32[8], index: 0, kind: input, shape index: {}]
  %s1 = inlined_call_operand.vmem [shape: f32[2,3,256], index: 1, kind: input, shape index: {}]
  %s2 = inlined_call_operand.vmem [shape: f32[32,3,128], index: 2, kind: input, shape index: {}]
  %s3 = inlined_call_operand.vmem [shape: f32[2,1024,4], index: 3, kind: input, shape index: {}]
  %s4 = inlined_call_operand.vmem [shape: f32[32,32], index: 4, kind: input, shape index: {}]
  %s5 = inlined_call_operand.vmem [shape: f32[32,1], index: 5, kind: input, shape index: {}]
  %s6 = inlined_call_operand.hbm [shape: f32[2,32,256], index: 6, kind: output, shape index: {}]
  %s7 = sld [smem:[#allocation0]]
  $region72: #{field_conv.1} parent=0
    _
  %s9 = ssub.s32 1, %s7
  %s10 = scalar_select 0, %s9, %s7
  %s12 = sshll.u32 %s0, 4
  %s13 = int_to_ptr.vmem [resolvable:$true] %s12
  %15 = dma.vmem_to_smem %s13, 16, [#allocation4], [#allocation3]
  %17 = dma.done [#allocation3], 16
  %18 = sfence
  $region1: #{field_conv.1} parent=0
    #allocation5 [shape = 'u8[32768]{0}', space=vmem, size = 0x8000, scoped, tag = 'output window, operand 0']
    #allocation6 [shape = 's32[2]{0}', space=sflag, size = 0x8, scoped, tag = 'scoped memory for field_conv.1']
    %19 = vsyncpa [#allocation6], 0
    %s20 = scalar_lea.sflag [#allocation6], 1
    %21 = vsyncpa %s20, 0
    loop: start=0, step=1, limit=10
    $region2: #{field_conv.1} parent=1 // loop_pre_header
      _
    $region3: #{field_conv.1} parent=1 // loop_header
      %s23 = sphi 0, %s27
      %p24 = scmp.ge.s32.totalorder %s23, 10
      %s30 = sphi 0, %s49
      %s31 = sphi 0, %s45
      %s32 = sphi 0, %s41
      %s33 = sphi 0, %s30
      %s34 = sphi 0, %s31
      %s35 = sphi 0, %s32
      %s36 = sphi 0, %s33
      %s37 = sphi 0, %s34
      %s38 = sphi 0, %s35
      %s54 = sphi 0, %s56
      %s57 = sphi 0, %s54
      %s58 = sphi 0, %s57
      %s74 = sphi 0, %s58
      %s78 = sphi 0, %s78
      %s80 = sphi 0, %s78
      %s81 = sphi 0, %s80
      %s95 = sphi 0, %s81
      %s103 = sphi 0, %s105
      %s106 = sphi 0, %s103
      %s107 = sphi 0, %s106
      %s123 = sphi 0, %s107
      %s127 = sphi 0, %s127
      %s129 = sphi 0, %s127
      %s130 = sphi 0, %s129
      %s144 = sphi 0, %s130
      %s148 = sphi 0, %s148
      %s150 = sphi 0, %s148
      %s151 = sphi 0, %s150
      %s165 = sphi 0, %s151
      %s173 = sphi 0, %s175
      %s176 = sphi 0, %s173
      %s177 = sphi 0, %s176
      %s193 = sphi 0, %s177
    $region4: #{field_conv.1} parent=1 // loop_header_branch
      %26 = sbr.rel (%p24) target = $region8
    $region5: #{field_conv.1} parent=1 // loop_body
      %s28 = ssub.s32 %s23, 1
      %s29 = ssub.s32 %s23, 2
      %s39 = sadd.s32 1, %s32
      %p40 = scmp.ge.s32.totalorder %s39, 2
      %s41 = scalar_select %p40, 0, %s39
      %s42 = sadd.s32 1, %s31
      %s43 = scalar_select %p40, %s42, %s31
      %p44 = scmp.ge.s32.totalorder %s43, 2
      %s45 = scalar_select %p44, 0, %s43
      %s46 = sadd.s32 1, %s30
      %s47 = scalar_select %p44, %s46, %s30
      %p48 = scmp.ge.s32.totalorder %s47, 2
      %s49 = scalar_select %p48, 0, %s47
      %s50 = ssub.s32 %s30, %s49
      %s51 = ssub.s32 %s31, %s45
      %s52 = sor.u32 %s50, %s51
      %p53 = scmp.eq.s32.totalorder %s52, 0
      %s55 = sadd.s32 %s54, 1
      %s56 = scalar_select %p53, %s54, %s55
      %p59 = pneg %p53
      %p60 = scmp.eq.s32.totalorder %s23, 7
      %p61 = por %p59, %p60
      %p62 = scmp.ne.s32.totalorder %s54, %s57
      %p63 = scmp.eq.s32.totalorder %s23, 0
      %p64 = por %p62, %p63
      %p65 = scmp.ne.s32.totalorder %s54, %s57
      %p66 = scmp.eq.s32.totalorder %s28, 7
      %p67 = por %p65, %p66
      %p68 = scmp.ne.s32.totalorder %s57, %s58
      %p69 = scmp.eq.s32.totalorder %s28, 0
      %p70 = por %p68, %p69
      %p71 = scmp.ne.s32.totalorder %s57, %s58
      %p72 = scmp.eq.s32.totalorder %s29, 7
      %p73 = por %p71, %p72
      %p75 = scmp.ne.s32.totalorder %s58, %s74
      %p76 = scmp.eq.s32.totalorder %s29, 0
      %p77 = por %p75, %p76
      %s79 = sadd.s32 %s78, 1
      %p82 = scmp.eq.s32.totalorder %s23, 7
      %p83 = scmp.ne.s32.totalorder %s78, %s80
      %p84 = scmp.eq.s32.totalorder %s23, 0
      %p85 = por %p83, %p84
      %p86 = scmp.ne.s32.totalorder %s78, %s80
      %p87 = scmp.eq.s32.totalorder %s28, 7
      %p88 = por %p86, %p87
      %p89 = scmp.ne.s32.totalorder %s80, %s81
      %p90 = scmp.eq.s32.totalorder %s28, 0
      %p91 = por %p89, %p90
      %p92 = scmp.ne.s32.totalorder %s80, %s81
      %p93 = scmp.eq.s32.totalorder %s29, 7
      %p94 = por %p92, %p93
      %p96 = scmp.ne.s32.totalorder %s81, %s95
      %p97 = scmp.eq.s32.totalorder %s29, 0
      %p98 = por %p96, %p97
      %s99 = ssub.s32 %s30, %s49
      %s100 = ssub.s32 %s32, %s41
      %s101 = sor.u32 %s99, %s100
      %p102 = scmp.eq.s32.totalorder %s101, 0
      %s104 = sadd.s32 %s103, 1
      %s105 = scalar_select %p102, %s103, %s104
      %p108 = pneg %p102
      %p109 = scmp.eq.s32.totalorder %s23, 7
      %p110 = por %p108, %p109
      %p111 = scmp.ne.s32.totalorder %s103, %s106
      %p112 = scmp.eq.s32.totalorder %s23, 0
      %p113 = por %p111, %p112
      %p114 = scmp.ne.s32.totalorder %s103, %s106
      %p115 = scmp.eq.s32.totalorder %s28, 7
      %p116 = por %p114, %p115
      %p117 = scmp.ne.s32.totalorder %s106, %s107
      %p118 = scmp.eq.s32.totalorder %s28, 0
      %p119 = por %p117, %p118
      %p120 = scmp.ne.s32.totalorder %s106, %s107
      %p121 = scmp.eq.s32.totalorder %s29, 7
      %p122 = por %p120, %p121
      %p124 = scmp.ne.s32.totalorder %s107, %s123
      %p125 = scmp.eq.s32.totalorder %s29, 0
      %p126 = por %p124, %p125
      %s128 = sadd.s32 %s127, 1
      %p131 = scmp.eq.s32.totalorder %s23, 7
      %p132 = scmp.ne.s32.totalorder %s127, %s129
      %p133 = scmp.eq.s32.totalorder %s23, 0
      %p134 = por %p132, %p133
      %p135 = scmp.ne.s32.totalorder %s127, %s129
      %p136 = scmp.eq.s32.totalorder %s28, 7
      %p137 = por %p135, %p136
      %p138 = scmp.ne.s32.totalorder %s129, %s130
      %p139 = scmp.eq.s32.totalorder %s28, 0
      %p140 = por %p138, %p139
      %p141 = scmp.ne.s32.totalorder %s129, %s130
      %p142 = scmp.eq.s32.totalorder %s29, 7
      %p143 = por %p141, %p142
      %p145 = scmp.ne.s32.totalorder %s130, %s144
      %p146 = scmp.eq.s32.totalorder %s29, 0
      %p147 = por %p145, %p146
      %s149 = sadd.s32 %s148, 1
      %p152 = scmp.eq.s32.totalorder %s23, 7
      %p153 = scmp.ne.s32.totalorder %s148, %s150
      %p154 = scmp.eq.s32.totalorder %s23, 0
      %p155 = por %p153, %p154
      %p156 = scmp.ne.s32.totalorder %s148, %s150
      %p157 = scmp.eq.s32.totalorder %s28, 7
      %p158 = por %p156, %p157
      %p159 = scmp.ne.s32.totalorder %s150, %s151
      %p160 = scmp.eq.s32.totalorder %s28, 0
      %p161 = por %p159, %p160
      %p162 = scmp.ne.s32.totalorder %s150, %s151
      %p163 = scmp.eq.s32.totalorder %s29, 7
      %p164 = por %p162, %p163
      %p166 = scmp.ne.s32.totalorder %s151, %s165
      %p167 = scmp.eq.s32.totalorder %s29, 0
      %p168 = por %p166, %p167
      %s169 = ssub.s32 %s30, %s49
      %s170 = ssub.s32 %s31, %s45
      %s171 = sor.u32 %s169, %s170
      %p172 = scmp.eq.s32.totalorder %s171, 0
      %s174 = sadd.s32 %s173, 1
      %s175 = scalar_select %p172, %s173, %s174
      %p178 = pneg %p172
      %p179 = scmp.eq.s32.totalorder %s23, 7
      %p180 = por %p178, %p179
      %p181 = scmp.ne.s32.totalorder %s173, %s176
      %p182 = scmp.eq.s32.totalorder %s23, 0
      %p183 = por %p181, %p182
      %p184 = scmp.ne.s32.totalorder %s173, %s176
      %p185 = scmp.eq.s32.totalorder %s28, 7
      %p186 = por %p184, %p185
      %p187 = scmp.ne.s32.totalorder %s176, %s177
      %p188 = scmp.eq.s32.totalorder %s28, 0
      %p189 = por %p187, %p188
      %p190 = scmp.ne.s32.totalorder %s176, %s177
      %p191 = scmp.eq.s32.totalorder %s29, 7
      %p192 = por %p190, %p191
      %p194 = scmp.ne.s32.totalorder %s177, %s193
      %p195 = scmp.eq.s32.totalorder %s29, 0
      %p196 = por %p194, %p195
      %p197 = scmp.le.s32.totalorder 1, %s23
      %p198 = scmp.lt.s32.totalorder %s23, 9
      %p199 = pnand %p197, %p198
      %p200 = pneg %p199
      // Predicated region
      $region9: #{field_conv.1} parent=5 // pred_check
        _
      $region10: #{field_conv.1} parent=5 // pred_check_branch
        %202 = sbr.rel (%p199) target = $region12
      $region11: #{field_conv.1} parent=5 // pred_region
        %s203 = ssub.s32 %s23, 1
        // Predicated region
        $region13: #{field_conv.1} parent=11 // pred_check
          %p204 = pneg %p91
        $region14: #{field_conv.1} parent=11 // pred_check_branch
          %206 = sbr.rel (%p204) target = $region16
        $region15: #{field_conv.1} parent=11 // pred_region
          _
        $region16: #{field_conv.1} parent=11 // pred_fallthru
          _
        // Predicated region
        $region17: #{field_conv.1} parent=11 // pred_check
          %p207 = pneg %p140
        $region18: #{field_conv.1} parent=11 // pred_check_branch
          %209 = sbr.rel (%p207) target = $region20
        $region19: #{field_conv.1} parent=11 // pred_region
          _
        $region20: #{field_conv.1} parent=11 // pred_fallthru
          _
        // Predicated region
        $region21: #{field_conv.1} parent=11 // pred_check
          %p210 = pneg %p161
        $region22: #{field_conv.1} parent=11 // pred_check_branch
          %212 = sbr.rel (%p210) target = $region24
        $region23: #{field_conv.1} parent=11 // pred_region
          _
        $region24: #{field_conv.1} parent=11 // pred_fallthru
          _
      $region12: #{field_conv.1} parent=5 // pred_fallthru
        _
      %p213 = scmp.lt.s32.totalorder %s23, 8
      // Predicated region
      $region25: #{field_conv.1} parent=5 // pred_check
        %p214 = pneg %p213
      $region26: #{field_conv.1} parent=5 // pred_check_branch
        %216 = sbr.rel (%p214) target = $region28
      $region27: #{field_conv.1} parent=5 // pred_region
        // Predicated region
        $region29: #{field_conv.1} parent=27 // pred_check
          %p217 = pneg %p64
        $region30: #{field_conv.1} parent=27 // pred_check_branch
          %219 = sbr.rel (%p217) target = $region32
        $region31: #{field_conv.1} parent=27 // pred_region
          %p220 = scmp.lt.s32.totalorder %s30, 1
          %s221 = scalar_select %p220, %s30, 1
          %p222 = scmp.lt.s32.totalorder %s31, 1
          %s223 = scalar_select %p222, %s31, 1
          %s224 = smul.addr %s221, 2
          %s225 = sadd.s32 %s223, %s224
          %s226 = smul.addr %s225, 4
          %s227 = scalar_lea.vmem %s1, %s226
        $region32: #{field_conv.1} parent=27 // pred_fallthru
          _
        // Predicated region
        $region33: #{field_conv.1} parent=27 // pred_check
          %p228 = pneg %p113
        $region34: #{field_conv.1} parent=27 // pred_check_branch
          %230 = sbr.rel (%p228) target = $region36
        $region35: #{field_conv.1} parent=27 // pred_region
          %s231 = smul.u32 64, %s32
          %p232 = scmp.lt.s32.totalorder %s30, 1
          %s233 = scalar_select %p232, %s30, 1
          %p234 = scmp.lt.s32.totalorder %s231, 127
          %s235 = scalar_select %p234, %s231, 127
          %s236 = smul.addr %s233, 128
          %s237 = sadd.s32 %s235, %s236
          %s238 = smul.addr %s237, 8
          %s239 = scalar_lea.vmem %s3, %s238
          %s240 = smul.u32 64, %s32
        $region36: #{field_conv.1} parent=27 // pred_fallthru
          _
      $region28: #{field_conv.1} parent=5 // pred_fallthru
        _
      %p241 = scmp.le.s32.totalorder 1, %s23
      %p242 = scmp.lt.s32.totalorder %s23, 9
      %p243 = pnand %p241, %p242
      %p244 = pneg %p243
      // Predicated region
      $region37: #{field_conv.1} parent=5 // pred_check
        _
      $region38: #{field_conv.1} parent=5 // pred_check_branch
        %246 = sbr.rel (%p243) target = $region40
      $region39: #{field_conv.1} parent=5 // pred_region
        %s247 = ssub.s32 %s23, 1
        %p248 = scmp.lt.s32.totalorder %s33, 1
        %s249 = scalar_select %p248, %s33, 1
        %p250 = scmp.lt.s32.totalorder %s34, 1
        %s251 = scalar_select %p250, %s34, 1
        %s252 = smul.addr %s249, 2
        %s253 = sadd.s32 %s251, %s252
        %s254 = smul.addr %s253, 4
        %s255 = scalar_lea.vmem %s1, %s254
        %p256 = pneg %p70
        %p257 = pneg %p67
        %p258 = pneg %p91
        %p259 = pneg %p88
        %s260 = smul.u32 64, %s35
        %p261 = scmp.lt.s32.totalorder %s33, 1
        %s262 = scalar_select %p261, %s33, 1
        %p263 = scmp.lt.s32.totalorder %s260, 127
        %s264 = scalar_select %p263, %s260, 127
        %s265 = smul.addr %s262, 128
        %s266 = sadd.s32 %s264, %s265
        %s267 = smul.addr %s266, 8
        %s268 = scalar_lea.vmem %s3, %s267
        %p269 = pneg %p119
        %p270 = pneg %p116
        %p271 = pneg %p140
        %p272 = pneg %p137
        %p273 = pneg %p161
        %p274 = pneg %p158
        %p275 = pneg %p189
        %p276 = pneg %p186
        %s277 = sand.u32 %s176, 1
        %s278 = scalar_lea.sflag [#allocation6], %s277
        %s279 = sand.u32 %s176, 1
        %s280 = smul.addr %s279, 32
        %s281 = scalar_lea.vmem [#allocation5], %s280
        %p282 = scmp.lt.s32.totalorder %s33, 1
        %s283 = scalar_select %p282, %s33, 1
        %p284 = scmp.lt.s32.totalorder %s34, 1
        %s285 = scalar_select %p284, %s34, 1
        %s286 = smul.addr %s283, 2
        %s287 = sadd.s32 %s285, %s286
        %s288 = smul.addr %s287, 4
        %s289 = scalar_lea.vmem %s1, %s288
        %s290 = smul.u32 64, %s35
        %p291 = scmp.lt.s32.totalorder %s33, 1
        %s292 = scalar_select %p291, %s33, 1
        %p293 = scmp.lt.s32.totalorder %s290, 127
        %s294 = scalar_select %p293, %s290, 127
        %s295 = smul.addr %s292, 128
        %s296 = sadd.s32 %s294, %s295
        %s297 = smul.addr %s296, 8
        %s298 = scalar_lea.vmem %s3, %s297
        %s299 = smul.u32 64, %s35
        %p300 = scmp.eq.s32.totalorder %s35, 0
        // Predicated region
        $region41: #{field_conv.1} parent=39 // pred_check
          %p301 = pneg %p300
        $region42: #{field_conv.1} parent=39 // pred_check_branch
          %303 = sbr.rel (%p301) target = $region44
        $region43: #{field_conv.1} parent=39 // pred_region
          %304 = vst [vmem:[#allocation2] sm:$0xff] 0.0
          %305 = vst [vmem:[#allocation2 + $0x8] sm:$0xff] 0.0
          %306 = vst [vmem:[#allocation2 + $0x10] sm:$0xff] 0.0
          %307 = vst [vmem:[#allocation2 + $0x18] sm:$0xff] 0.0
          %308 = vst [vmem:[#allocation2 + $0x20] sm:$0xff] 0.0
          %309 = vst [vmem:[#allocation2 + $0x28] sm:$0xff] 0.0
          %310 = vst [vmem:[#allocation2 + $0x30] sm:$0xff] 0.0
          %311 = vst [vmem:[#allocation2 + $0x38] sm:$0xff] 0.0
        $region44: #{field_conv.1} parent=39 // pred_fallthru
          _
        %s312 = smul.u32 %s33, 2
        %s313 = sadd.s32 %s312, %s34
        %s314 = smul.u32 %s313, 2
        %s315 = sadd.s32 %s314, %s35
        %s316 = sld [smem:[#allocation4 + %s315]]
        %p317 = scmp.gt.s32.totalorder %s316, 0
        // Predicated region
        $region45: #{field_conv.1} parent=39 // pred_check
          %p318 = pneg %p317
        $region46: #{field_conv.1} parent=39 // pred_check_branch
          %320 = sbr.rel (%p318) target = $region48
        $region47: #{field_conv.1} parent=39 // pred_region
          %v321 = vld [vmem:[%s298] sm:$0xff]
          %v322 = vld [vmem:[%s298 + $0x8] sm:$0xff]
          %v323 = vld [vmem:[%s298 + $0x10] sm:$0xff]
          %v324 = vld [vmem:[%s298 + $0x18] sm:$0xff]
          %v325 = vld [vmem:[%s298 + $0x20] sm:$0xff]
          %v326 = vld [vmem:[%s298 + $0x28] sm:$0xff]
          %v327 = vld [vmem:[%s298 + $0x30] sm:$0xff]
          %v328 = vld [vmem:[%s298 + $0x38] sm:$0xff]
          %v329 = vld [vmem:[%s298 + $0x40] sm:$0xff]
          %v330 = vld [vmem:[%s298 + $0x48] sm:$0xff]
          %v331 = vld [vmem:[%s298 + $0x50] sm:$0xff]
          %v332 = vld [vmem:[%s298 + $0x58] sm:$0xff]
          %v333 = vld [vmem:[%s298 + $0x60] sm:$0xff]
          %v334 = vld [vmem:[%s298 + $0x68] sm:$0xff]
          %v335 = vld [vmem:[%s298 + $0x70] sm:$0xff]
          %v336 = vld [vmem:[%s298 + $0x78] sm:$0xff]
          %v337 = vld [vmem:[%s298 + $0x80] sm:$0xff]
          %v338 = vld [vmem:[%s298 + $0x88] sm:$0xff]
          %v339 = vld [vmem:[%s298 + $0x90] sm:$0xff]
          %v340 = vld [vmem:[%s298 + $0x98] sm:$0xff]
          %v341 = vld [vmem:[%s298 + $0xa0] sm:$0xff]
          %v342 = vld [vmem:[%s298 + $0xa8] sm:$0xff]
          %v343 = vld [vmem:[%s298 + $0xb0] sm:$0xff]
          %v344 = vld [vmem:[%s298 + $0xb8] sm:$0xff]
          %v345 = vld [vmem:[%s298 + $0xc0] sm:$0xff]
          %v346 = vld [vmem:[%s298 + $0xc8] sm:$0xff]
          %v347 = vld [vmem:[%s298 + $0xd0] sm:$0xff]
          %v348 = vld [vmem:[%s298 + $0xd8] sm:$0xff]
          %v349 = vld [vmem:[%s298 + $0xe0] sm:$0xff]
          %v350 = vld [vmem:[%s298 + $0xe8] sm:$0xff]
          %v351 = vld [vmem:[%s298 + $0xf0] sm:$0xff]
          %v352 = vld [vmem:[%s298 + $0xf8] sm:$0xff]
          %v353 = vld [vmem:[%s298 + $0x100] sm:$0xff]
          %v354 = vld [vmem:[%s298 + $0x108] sm:$0xff]
          %v355 = vld [vmem:[%s298 + $0x110] sm:$0xff]
          %v356 = vld [vmem:[%s298 + $0x118] sm:$0xff]
          %v357 = vld [vmem:[%s298 + $0x120] sm:$0xff]
          %v358 = vld [vmem:[%s298 + $0x128] sm:$0xff]
          %v359 = vld [vmem:[%s298 + $0x130] sm:$0xff]
          %v360 = vld [vmem:[%s298 + $0x138] sm:$0xff]
          %v361 = vld [vmem:[%s298 + $0x140] sm:$0xff]
          %v362 = vld [vmem:[%s298 + $0x148] sm:$0xff]
          %v363 = vld [vmem:[%s298 + $0x150] sm:$0xff]
          %v364 = vld [vmem:[%s298 + $0x158] sm:$0xff]
          %v365 = vld [vmem:[%s298 + $0x160] sm:$0xff]
          %v366 = vld [vmem:[%s298 + $0x168] sm:$0xff]
          %v367 = vld [vmem:[%s298 + $0x170] sm:$0xff]
          %v368 = vld [vmem:[%s298 + $0x178] sm:$0xff]
          %v369 = vld [vmem:[%s298 + $0x180] sm:$0xff]
          %v370 = vld [vmem:[%s298 + $0x188] sm:$0xff]
          %v371 = vld [vmem:[%s298 + $0x190] sm:$0xff]
          %v372 = vld [vmem:[%s298 + $0x198] sm:$0xff]
          %v373 = vld [vmem:[%s298 + $0x1a0] sm:$0xff]
          %v374 = vld [vmem:[%s298 + $0x1a8] sm:$0xff]
          %v375 = vld [vmem:[%s298 + $0x1b0] sm:$0xff]
          %v376 = vld [vmem:[%s298 + $0x1b8] sm:$0xff]
          %v377 = vld [vmem:[%s298 + $0x1c0] sm:$0xff]
          %v378 = vld [vmem:[%s298 + $0x1c8] sm:$0xff]
          %v379 = vld [vmem:[%s298 + $0x1d0] sm:$0xff]
          %v380 = vld [vmem:[%s298 + $0x1d8] sm:$0xff]
          %v381 = vld [vmem:[%s298 + $0x1e0] sm:$0xff]
          %v382 = vld [vmem:[%s298 + $0x1e8] sm:$0xff]
          %v383 = vld [vmem:[%s298 + $0x1f0] sm:$0xff]
          %v384 = vld [vmem:[%s298 + $0x1f8] sm:$0xff]
          %v385 = vmul.f32 %v321, 70.71068
          %v386 = vmul.f32 %v322, 70.71068
          %v387 = vmul.f32 %v323, 70.71068
          %v388 = vmul.f32 %v324, 70.71068
          %v389 = vmul.f32 %v325, 70.71068
          %v390 = vmul.f32 %v326, 70.71068
          %v391 = vmul.f32 %v327, 70.71068
          %v392 = vmul.f32 %v328, 70.71068
          %v393 = vmul.f32 %v329, 70.71068
          %v394 = vmul.f32 %v330, 70.71068
          %v395 = vmul.f32 %v331, 70.71068
          %v396 = vmul.f32 %v332, 70.71068
          %v397 = vmul.f32 %v333, 70.71068
          %v398 = vmul.f32 %v334, 70.71068
          %v399 = vmul.f32 %v335, 70.71068
          %v400 = vmul.f32 %v336, 70.71068
          %v401 = vmul.f32 %v337, 70.71068
          %v402 = vmul.f32 %v338, 70.71068
          %v403 = vmul.f32 %v339, 70.71068
          %v404 = vmul.f32 %v340, 70.71068
          %v405 = vmul.f32 %v341, 70.71068
          %v406 = vmul.f32 %v342, 70.71068
          %v407 = vmul.f32 %v343, 70.71068
          %v408 = vmul.f32 %v344, 70.71068
          %v409 = vmul.f32 %v345, 70.71068
          %v410 = vmul.f32 %v346, 70.71068
          %v411 = vmul.f32 %v347, 70.71068
          %v412 = vmul.f32 %v348, 70.71068
          %v413 = vmul.f32 %v349, 70.71068
          %v414 = vmul.f32 %v350, 70.71068
          %v415 = vmul.f32 %v351, 70.71068
          %v416 = vmul.f32 %v352, 70.71068
          %v417 = vmul.f32 %v353, 70.71068
          %v418 = vmul.f32 %v354, 70.71068
          %v419 = vmul.f32 %v355, 70.71068
          %v420 = vmul.f32 %v356, 70.71068
          %v421 = vmul.f32 %v357, 70.71068
          %v422 = vmul.f32 %v358, 70.71068
          %v423 = vmul.f32 %v359, 70.71068
          %v424 = vmul.f32 %v360, 70.71068
          %v425 = vmul.f32 %v361, 70.71068
          %v426 = vmul.f32 %v362, 70.71068
          %v427 = vmul.f32 %v363, 70.71068
          %v428 = vmul.f32 %v364, 70.71068
          %v429 = vmul.f32 %v365, 70.71068
          %v430 = vmul.f32 %v366, 70.71068
          %v431 = vmul.f32 %v367, 70.71068
          %v432 = vmul.f32 %v368, 70.71068
          %v433 = vmul.f32 %v369, 70.71068
          %v434 = vmul.f32 %v370, 70.71068
          %v435 = vmul.f32 %v371, 70.71068
          %v436 = vmul.f32 %v372, 70.71068
          %v437 = vmul.f32 %v373, 70.71068
          %v438 = vmul.f32 %v374, 70.71068
          %v439 = vmul.f32 %v375, 70.71068
          %v440 = vmul.f32 %v376, 70.71068
          %v441 = vmul.f32 %v377, 70.71068
          %v442 = vmul.f32 %v378, 70.71068
          %v443 = vmul.f32 %v379, 70.71068
          %v444 = vmul.f32 %v380, 70.71068
          %v445 = vmul.f32 %v381, 70.71068
          %v446 = vmul.f32 %v382, 70.71068
          %v447 = vmul.f32 %v383, 70.71068
          %v448 = vmul.f32 %v384, 70.71068
          %513 = vrot.lane.b32.xlu0 %v321, 125
          %v514 = vpop.permute.xlu0 %513
          %515 = vrot.lane.b32.xlu0 %v322, 125
          %v516 = vpop.permute.xlu0 %515
          %517 = vrot.lane.b32.xlu0 %v323, 125
          %v518 = vpop.permute.xlu0 %517
          %519 = vrot.lane.b32.xlu0 %v324, 125
          %v520 = vpop.permute.xlu0 %519
          %521 = vrot.lane.b32.xlu0 %v325, 125
          %v522 = vpop.permute.xlu0 %521
          %523 = vrot.lane.b32.xlu0 %v326, 125
          %v524 = vpop.permute.xlu0 %523
          %525 = vrot.lane.b32.xlu0 %v327, 125
          %v526 = vpop.permute.xlu0 %525
          %527 = vrot.lane.b32.xlu0 %v328, 125
          %v528 = vpop.permute.xlu0 %527
          %529 = vrot.lane.b32.xlu0 %v329, 125
          %v530 = vpop.permute.xlu0 %529
          %531 = vrot.lane.b32.xlu0 %v330, 125
          %v532 = vpop.permute.xlu0 %531
          %533 = vrot.lane.b32.xlu0 %v331, 125
          %v534 = vpop.permute.xlu0 %533
          %535 = vrot.lane.b32.xlu0 %v332, 125
          %v536 = vpop.permute.xlu0 %535
          %537 = vrot.lane.b32.xlu0 %v333, 125
          %v538 = vpop.permute.xlu0 %537
          %539 = vrot.lane.b32.xlu0 %v334, 125
          %v540 = vpop.permute.xlu0 %539
          %541 = vrot.lane.b32.xlu0 %v335, 125
          %v542 = vpop.permute.xlu0 %541
          %543 = vrot.lane.b32.xlu0 %v336, 125
          %v544 = vpop.permute.xlu0 %543
          %545 = vrot.lane.b32.xlu0 %v337, 125
          %v546 = vpop.permute.xlu0 %545
          %547 = vrot.lane.b32.xlu0 %v338, 125
          %v548 = vpop.permute.xlu0 %547
          %549 = vrot.lane.b32.xlu0 %v339, 125
          %v550 = vpop.permute.xlu0 %549
          %551 = vrot.lane.b32.xlu0 %v340, 125
          %v552 = vpop.permute.xlu0 %551
          %553 = vrot.lane.b32.xlu0 %v341, 125
          %v554 = vpop.permute.xlu0 %553
          %555 = vrot.lane.b32.xlu0 %v342, 125
          %v556 = vpop.permute.xlu0 %555
          %557 = vrot.lane.b32.xlu0 %v343, 125
          %v558 = vpop.permute.xlu0 %557
          %559 = vrot.lane.b32.xlu0 %v344, 125
          %v560 = vpop.permute.xlu0 %559
          %561 = vrot.lane.b32.xlu0 %v345, 125
          %v562 = vpop.permute.xlu0 %561
          %563 = vrot.lane.b32.xlu0 %v346, 125
          %v564 = vpop.permute.xlu0 %563
          %565 = vrot.lane.b32.xlu0 %v347, 125
          %v566 = vpop.permute.xlu0 %565
          %567 = vrot.lane.b32.xlu0 %v348, 125
          %v568 = vpop.permute.xlu0 %567
          %569 = vrot.lane.b32.xlu0 %v349, 125
          %v570 = vpop.permute.xlu0 %569
          %571 = vrot.lane.b32.xlu0 %v350, 125
          %v572 = vpop.permute.xlu0 %571
          %573 = vrot.lane.b32.xlu0 %v351, 125
          %v574 = vpop.permute.xlu0 %573
          %575 = vrot.lane.b32.xlu0 %v352, 125
          %v576 = vpop.permute.xlu0 %575
          %577 = vrot.lane.b32.xlu0 %v353, 125
          %v578 = vpop.permute.xlu0 %577
          %579 = vrot.lane.b32.xlu0 %v354, 125
          %v580 = vpop.permute.xlu0 %579
          %581 = vrot.lane.b32.xlu0 %v355, 125
          %v582 = vpop.permute.xlu0 %581
          %583 = vrot.lane.b32.xlu0 %v356, 125
          %v584 = vpop.permute.xlu0 %583
          %585 = vrot.lane.b32.xlu0 %v357, 125
          %v586 = vpop.permute.xlu0 %585
          %587 = vrot.lane.b32.xlu0 %v358, 125
          %v588 = vpop.permute.xlu0 %587
          %589 = vrot.lane.b32.xlu0 %v359, 125
          %v590 = vpop.permute.xlu0 %589
          %591 = vrot.lane.b32.xlu0 %v360, 125
          %v592 = vpop.permute.xlu0 %591
          %593 = vrot.lane.b32.xlu0 %v361, 125
          %v594 = vpop.permute.xlu0 %593
          %595 = vrot.lane.b32.xlu0 %v362, 125
          %v596 = vpop.permute.xlu0 %595
          %597 = vrot.lane.b32.xlu0 %v363, 125
          %v598 = vpop.permute.xlu0 %597
          %599 = vrot.lane.b32.xlu0 %v364, 125
          %v600 = vpop.permute.xlu0 %599
          %601 = vrot.lane.b32.xlu0 %v365, 125
          %v602 = vpop.permute.xlu0 %601
          %603 = vrot.lane.b32.xlu0 %v366, 125
          %v604 = vpop.permute.xlu0 %603
          %605 = vrot.lane.b32.xlu0 %v367, 125
          %v606 = vpop.permute.xlu0 %605
          %607 = vrot.lane.b32.xlu0 %v368, 125
          %v608 = vpop.permute.xlu0 %607
          %609 = vrot.lane.b32.xlu0 %v369, 125
          %v610 = vpop.permute.xlu0 %609
          %611 = vrot.lane.b32.xlu0 %v370, 125
          %v612 = vpop.permute.xlu0 %611
          %613 = vrot.lane.b32.xlu0 %v371, 125
          %v614 = vpop.permute.xlu0 %613
          %615 = vrot.lane.b32.xlu0 %v372, 125
          %v616 = vpop.permute.xlu0 %615
          %617 = vrot.lane.b32.xlu0 %v373, 125
          %v618 = vpop.permute.xlu0 %617
          %619 = vrot.lane.b32.xlu0 %v374, 125
          %v620 = vpop.permute.xlu0 %619
          %621 = vrot.lane.b32.xlu0 %v375, 125
          %v622 = vpop.permute.xlu0 %621
          %623 = vrot.lane.b32.xlu0 %v376, 125
          %v624 = vpop.permute.xlu0 %623
          %625 = vrot.lane.b32.xlu0 %v377, 125
          %v626 = vpop.permute.xlu0 %625
          %627 = vrot.lane.b32.xlu0 %v378, 125
          %v628 = vpop.permute.xlu0 %627
          %629 = vrot.lane.b32.xlu0 %v379, 125
          %v630 = vpop.permute.xlu0 %629
          %631 = vrot.lane.b32.xlu0 %v380, 125
          %v632 = vpop.permute.xlu0 %631
          %633 = vrot.lane.b32.xlu0 %v381, 125
          %v634 = vpop.permute.xlu0 %633
          %635 = vrot.lane.b32.xlu0 %v382, 125
          %v636 = vpop.permute.xlu0 %635
          %637 = vrot.lane.b32.xlu0 %v383, 125
          %v638 = vpop.permute.xlu0 %637
          %639 = vrot.lane.b32.xlu0 %v384, 125
          %v640 = vpop.permute.xlu0 %639
          %vm705 = vcmask 7168
          %v706 = vsel %vm705, %v514, 1.0
          %v707 = vsel %vm705, %v516, 1.0
          %v708 = vsel %vm705, %v518, 1.0
          %v709 = vsel %vm705, %v520, 1.0
          %v710 = vsel %vm705, %v522, 1.0
          %v711 = vsel %vm705, %v524, 1.0
          %v712 = vsel %vm705, %v526, 1.0
          %v713 = vsel %vm705, %v528, 1.0
          %v714 = vsel %vm705, %v530, 1.0
          %v715 = vsel %vm705, %v532, 1.0
          %v716 = vsel %vm705, %v534, 1.0
          %v717 = vsel %vm705, %v536, 1.0
          %v718 = vsel %vm705, %v538, 1.0
          %v719 = vsel %vm705, %v540, 1.0
          %v720 = vsel %vm705, %v542, 1.0
          %v721 = vsel %vm705, %v544, 1.0
          %v722 = vsel %vm705, %v546, 1.0
          %v723 = vsel %vm705, %v548, 1.0
          %v724 = vsel %vm705, %v550, 1.0
          %v725 = vsel %vm705, %v552, 1.0
          %v726 = vsel %vm705, %v554, 1.0
          %v727 = vsel %vm705, %v556, 1.0
          %v728 = vsel %vm705, %v558, 1.0
          %v729 = vsel %vm705, %v560, 1.0
          %v730 = vsel %vm705, %v562, 1.0
          %v731 = vsel %vm705, %v564, 1.0
          %v732 = vsel %vm705, %v566, 1.0
          %v733 = vsel %vm705, %v568, 1.0
          %v734 = vsel %vm705, %v570, 1.0
          %v735 = vsel %vm705, %v572, 1.0
          %v736 = vsel %vm705, %v574, 1.0
          %v737 = vsel %vm705, %v576, 1.0
          %v738 = vsel %vm705, %v578, 1.0
          %v739 = vsel %vm705, %v580, 1.0
          %v740 = vsel %vm705, %v582, 1.0
          %v741 = vsel %vm705, %v584, 1.0
          %v742 = vsel %vm705, %v586, 1.0
          %v743 = vsel %vm705, %v588, 1.0
          %v744 = vsel %vm705, %v590, 1.0
          %v745 = vsel %vm705, %v592, 1.0
          %v746 = vsel %vm705, %v594, 1.0
          %v747 = vsel %vm705, %v596, 1.0
          %v748 = vsel %vm705, %v598, 1.0
          %v749 = vsel %vm705, %v600, 1.0
          %v750 = vsel %vm705, %v602, 1.0
          %v751 = vsel %vm705, %v604, 1.0
          %v752 = vsel %vm705, %v606, 1.0
          %v753 = vsel %vm705, %v608, 1.0
          %v754 = vsel %vm705, %v610, 1.0
          %v755 = vsel %vm705, %v612, 1.0
          %v756 = vsel %vm705, %v614, 1.0
          %v757 = vsel %vm705, %v616, 1.0
          %v758 = vsel %vm705, %v618, 1.0
          %v759 = vsel %vm705, %v620, 1.0
          %v760 = vsel %vm705, %v622, 1.0
          %v761 = vsel %vm705, %v624, 1.0
          %v762 = vsel %vm705, %v626, 1.0
          %v763 = vsel %vm705, %v628, 1.0
          %v764 = vsel %vm705, %v630, 1.0
          %v765 = vsel %vm705, %v632, 1.0
          %v766 = vsel %vm705, %v634, 1.0
          %v767 = vsel %vm705, %v636, 1.0
          %v768 = vsel %vm705, %v638, 1.0
          %v769 = vsel %vm705, %v640, 1.0
          %v770 = vld [vmem:[%s289] sm:$0x1]
          %772 = vset.pattern.permute.xlu0 0
          %773 = vperm.xlu0 %772, %v385
          %v774 = vpop.permute.xlu0 %773
          %777 = vset.pattern.permute.xlu0 0
          %778 = vperm.xlu0 %777, %v386
          %v779 = vpop.permute.xlu0 %778
          %782 = vset.pattern.permute.xlu0 0
          %783 = vperm.xlu0 %782, %v387
          %v784 = vpop.permute.xlu0 %783
          %787 = vset.pattern.permute.xlu0 0
          %788 = vperm.xlu0 %787, %v388
          %v789 = vpop.permute.xlu0 %788
          %792 = vset.pattern.permute.xlu0 0
          %793 = vperm.xlu0 %792, %v389
          %v794 = vpop.permute.xlu0 %793
          %797 = vset.pattern.permute.xlu0 0
          %798 = vperm.xlu0 %797, %v390
          %v799 = vpop.permute.xlu0 %798
          %802 = vset.pattern.permute.xlu0 0
          %803 = vperm.xlu0 %802, %v391
          %v804 = vpop.permute.xlu0 %803
          %807 = vset.pattern.permute.xlu0 0
          %808 = vperm.xlu0 %807, %v392
          %v809 = vpop.permute.xlu0 %808
          %812 = vset.pattern.permute.xlu0 0
          %813 = vperm.xlu0 %812, %v393
          %v814 = vpop.permute.xlu0 %813
          %817 = vset.pattern.permute.xlu0 0
          %818 = vperm.xlu0 %817, %v394
          %v819 = vpop.permute.xlu0 %818
          %822 = vset.pattern.permute.xlu0 0
          %823 = vperm.xlu0 %822, %v395
          %v824 = vpop.permute.xlu0 %823
          %827 = vset.pattern.permute.xlu0 0
          %828 = vperm.xlu0 %827, %v396
          %v829 = vpop.permute.xlu0 %828
          %832 = vset.pattern.permute.xlu0 0
          %833 = vperm.xlu0 %832, %v397
          %v834 = vpop.permute.xlu0 %833
          %837 = vset.pattern.permute.xlu0 0
          %838 = vperm.xlu0 %837, %v398
          %v839 = vpop.permute.xlu0 %838
          %842 = vset.pattern.permute.xlu0 0
          %843 = vperm.xlu0 %842, %v399
          %v844 = vpop.permute.xlu0 %843
          %847 = vset.pattern.permute.xlu0 0
          %848 = vperm.xlu0 %847, %v400
          %v849 = vpop.permute.xlu0 %848
          %852 = vset.pattern.permute.xlu0 0
          %853 = vperm.xlu0 %852, %v401
          %v854 = vpop.permute.xlu0 %853
          %857 = vset.pattern.permute.xlu0 0
          %858 = vperm.xlu0 %857, %v402
          %v859 = vpop.permute.xlu0 %858
          %862 = vset.pattern.permute.xlu0 0
          %863 = vperm.xlu0 %862, %v403
          %v864 = vpop.permute.xlu0 %863
          %867 = vset.pattern.permute.xlu0 0
          %868 = vperm.xlu0 %867, %v404
          %v869 = vpop.permute.xlu0 %868
          %872 = vset.pattern.permute.xlu0 0
          %873 = vperm.xlu0 %872, %v405
          %v874 = vpop.permute.xlu0 %873
          %877 = vset.pattern.permute.xlu0 0
          %878 = vperm.xlu0 %877, %v406
          %v879 = vpop.permute.xlu0 %878
          %882 = vset.pattern.permute.xlu0 0
          %883 = vperm.xlu0 %882, %v407
          %v884 = vpop.permute.xlu0 %883
          %887 = vset.pattern.permute.xlu0 0
          %888 = vperm.xlu0 %887, %v408
          %v889 = vpop.permute.xlu0 %888
          %892 = vset.pattern.permute.xlu0 0
          %893 = vperm.xlu0 %892, %v409
          %v894 = vpop.permute.xlu0 %893
          %897 = vset.pattern.permute.xlu0 0
          %898 = vperm.xlu0 %897, %v410
          %v899 = vpop.permute.xlu0 %898
          %902 = vset.pattern.permute.xlu0 0
          %903 = vperm.xlu0 %902, %v411
          %v904 = vpop.permute.xlu0 %903
          %907 = vset.pattern.permute.xlu0 0
          %908 = vperm.xlu0 %907, %v412
          %v909 = vpop.permute.xlu0 %908
          %912 = vset.pattern.permute.xlu0 0
          %913 = vperm.xlu0 %912, %v413
          %v914 = vpop.permute.xlu0 %913
          %917 = vset.pattern.permute.xlu0 0
          %918 = vperm.xlu0 %917, %v414
          %v919 = vpop.permute.xlu0 %918
          %922 = vset.pattern.permute.xlu0 0
          %923 = vperm.xlu0 %922, %v415
          %v924 = vpop.permute.xlu0 %923
          %927 = vset.pattern.permute.xlu0 0
          %928 = vperm.xlu0 %927, %v416
          %v929 = vpop.permute.xlu0 %928
          %932 = vset.pattern.permute.xlu0 0
          %933 = vperm.xlu0 %932, %v417
          %v934 = vpop.permute.xlu0 %933
          %937 = vset.pattern.permute.xlu0 0
          %938 = vperm.xlu0 %937, %v418
          %v939 = vpop.permute.xlu0 %938
          %942 = vset.pattern.permute.xlu0 0
          %943 = vperm.xlu0 %942, %v419
          %v944 = vpop.permute.xlu0 %943
          %947 = vset.pattern.permute.xlu0 0
          %948 = vperm.xlu0 %947, %v420
          %v949 = vpop.permute.xlu0 %948
          %952 = vset.pattern.permute.xlu0 0
          %953 = vperm.xlu0 %952, %v421
          %v954 = vpop.permute.xlu0 %953
          %957 = vset.pattern.permute.xlu0 0
          %958 = vperm.xlu0 %957, %v422
          %v959 = vpop.permute.xlu0 %958
          %962 = vset.pattern.permute.xlu0 0
          %963 = vperm.xlu0 %962, %v423
          %v964 = vpop.permute.xlu0 %963
          %967 = vset.pattern.permute.xlu0 0
          %968 = vperm.xlu0 %967, %v424
          %v969 = vpop.permute.xlu0 %968
          %972 = vset.pattern.permute.xlu0 0
          %973 = vperm.xlu0 %972, %v425
          %v974 = vpop.permute.xlu0 %973
          %977 = vset.pattern.permute.xlu0 0
          %978 = vperm.xlu0 %977, %v426
          %v979 = vpop.permute.xlu0 %978
          %982 = vset.pattern.permute.xlu0 0
          %983 = vperm.xlu0 %982, %v427
          %v984 = vpop.permute.xlu0 %983
          %987 = vset.pattern.permute.xlu0 0
          %988 = vperm.xlu0 %987, %v428
          %v989 = vpop.permute.xlu0 %988
          %992 = vset.pattern.permute.xlu0 0
          %993 = vperm.xlu0 %992, %v429
          %v994 = vpop.permute.xlu0 %993
          %997 = vset.pattern.permute.xlu0 0
          %998 = vperm.xlu0 %997, %v430
          %v999 = vpop.permute.xlu0 %998
          %1002 = vset.pattern.permute.xlu0 0
          %1003 = vperm.xlu0 %1002, %v431
          %v1004 = vpop.permute.xlu0 %1003
          %1007 = vset.pattern.permute.xlu0 0
          %1008 = vperm.xlu0 %1007, %v432
          %v1009 = vpop.permute.xlu0 %1008
          %1012 = vset.pattern.permute.xlu0 0
          %1013 = vperm.xlu0 %1012, %v433
          %v1014 = vpop.permute.xlu0 %1013
          %1017 = vset.pattern.permute.xlu0 0
          %1018 = vperm.xlu0 %1017, %v434
          %v1019 = vpop.permute.xlu0 %1018
          %1022 = vset.pattern.permute.xlu0 0
          %1023 = vperm.xlu0 %1022, %v435
          %v1024 = vpop.permute.xlu0 %1023
          %1027 = vset.pattern.permute.xlu0 0
          %1028 = vperm.xlu0 %1027, %v436
          %v1029 = vpop.permute.xlu0 %1028
          %1032 = vset.pattern.permute.xlu0 0
          %1033 = vperm.xlu0 %1032, %v437
          %v1034 = vpop.permute.xlu0 %1033
          %1037 = vset.pattern.permute.xlu0 0
          %1038 = vperm.xlu0 %1037, %v438
          %v1039 = vpop.permute.xlu0 %1038
          %1042 = vset.pattern.permute.xlu0 0
          %1043 = vperm.xlu0 %1042, %v439
          %v1044 = vpop.permute.xlu0 %1043
          %1047 = vset.pattern.permute.xlu0 0
          %1048 = vperm.xlu0 %1047, %v440
          %v1049 = vpop.permute.xlu0 %1048
          %1052 = vset.pattern.permute.xlu0 0
          %1053 = vperm.xlu0 %1052, %v441
          %v1054 = vpop.permute.xlu0 %1053
          %1057 = vset.pattern.permute.xlu0 0
          %1058 = vperm.xlu0 %1057, %v442
          %v1059 = vpop.permute.xlu0 %1058
          %1062 = vset.pattern.permute.xlu0 0
          %1063 = vperm.xlu0 %1062, %v443
          %v1064 = vpop.permute.xlu0 %1063
          %1067 = vset.pattern.permute.xlu0 0
          %1068 = vperm.xlu0 %1067, %v444
          %v1069 = vpop.permute.xlu0 %1068
          %1072 = vset.pattern.permute.xlu0 0
          %1073 = vperm.xlu0 %1072, %v445
          %v1074 = vpop.permute.xlu0 %1073
          %1077 = vset.pattern.permute.xlu0 0
          %1078 = vperm.xlu0 %1077, %v446
          %v1079 = vpop.permute.xlu0 %1078
          %1082 = vset.pattern.permute.xlu0 0
          %1083 = vperm.xlu0 %1082, %v447
          %v1084 = vpop.permute.xlu0 %1083
          %1087 = vset.pattern.permute.xlu0 0
          %1088 = vperm.xlu0 %1087, %v448
          %v1089 = vpop.permute.xlu0 %1088
          %v1091 = vperm.slane %v770, 0
          %v1092 = vsub.f32 %v774, %v1091
          %v1093 = vsub.f32 %v779, %v1091
          %v1094 = vsub.f32 %v784, %v1091
          %v1095 = vsub.f32 %v789, %v1091
          %v1096 = vsub.f32 %v794, %v1091
          %v1097 = vsub.f32 %v799, %v1091
          %v1098 = vsub.f32 %v804, %v1091
          %v1099 = vsub.f32 %v809, %v1091
          %v1100 = vsub.f32 %v814, %v1091
          %v1101 = vsub.f32 %v819, %v1091
          %v1102 = vsub.f32 %v824, %v1091
          %v1103 = vsub.f32 %v829, %v1091
          %v1104 = vsub.f32 %v834, %v1091
          %v1105 = vsub.f32 %v839, %v1091
          %v1106 = vsub.f32 %v844, %v1091
          %v1107 = vsub.f32 %v849, %v1091
          %v1108 = vsub.f32 %v854, %v1091
          %v1109 = vsub.f32 %v859, %v1091
          %v1110 = vsub.f32 %v864, %v1091
          %v1111 = vsub.f32 %v869, %v1091
          %v1112 = vsub.f32 %v874, %v1091
          %v1113 = vsub.f32 %v879, %v1091
          %v1114 = vsub.f32 %v884, %v1091
          %v1115 = vsub.f32 %v889, %v1091
          %v1116 = vsub.f32 %v894, %v1091
          %v1117 = vsub.f32 %v899, %v1091
          %v1118 = vsub.f32 %v904, %v1091
          %v1119 = vsub.f32 %v909, %v1091
          %v1120 = vsub.f32 %v914, %v1091
          %v1121 = vsub.f32 %v919, %v1091
          %v1122 = vsub.f32 %v924, %v1091
          %v1123 = vsub.f32 %v929, %v1091
          %v1124 = vsub.f32 %v934, %v1091
          %v1125 = vsub.f32 %v939, %v1091
          %v1126 = vsub.f32 %v944, %v1091
          %v1127 = vsub.f32 %v949, %v1091
          %v1128 = vsub.f32 %v954, %v1091
          %v1129 = vsub.f32 %v959, %v1091
          %v1130 = vsub.f32 %v964, %v1091
          %v1131 = vsub.f32 %v969, %v1091
          %v1132 = vsub.f32 %v974, %v1091
          %v1133 = vsub.f32 %v979, %v1091
          %v1134 = vsub.f32 %v984, %v1091
          %v1135 = vsub.f32 %v989, %v1091
          %v1136 = vsub.f32 %v994, %v1091
          %v1137 = vsub.f32 %v999, %v1091
          %v1138 = vsub.f32 %v1004, %v1091
          %v1139 = vsub.f32 %v1009, %v1091
          %v1140 = vsub.f32 %v1014, %v1091
          %v1141 = vsub.f32 %v1019, %v1091
          %v1142 = vsub.f32 %v1024, %v1091
          %v1143 = vsub.f32 %v1029, %v1091
          %v1144 = vsub.f32 %v1034, %v1091
          %v1145 = vsub.f32 %v1039, %v1091
          %v1146 = vsub.f32 %v1044, %v1091
          %v1147 = vsub.f32 %v1049, %v1091
          %v1148 = vsub.f32 %v1054, %v1091
          %v1149 = vsub.f32 %v1059, %v1091
          %v1150 = vsub.f32 %v1064, %v1091
          %v1151 = vsub.f32 %v1069, %v1091
          %v1152 = vsub.f32 %v1074, %v1091
          %v1153 = vsub.f32 %v1079, %v1091
          %v1154 = vsub.f32 %v1084, %v1091
          %v1155 = vsub.f32 %v1089, %v1091
          %v1156 = vld [vmem:[%s289 + $0x1] sm:$0x1]
          %1157 = vset.pattern.permute.xlu0 1
          %1158 = vperm.xlu0 %1157, %v385
          %v1159 = vpop.permute.xlu0 %1158
          %1161 = vset.pattern.permute.xlu0 1
          %1162 = vperm.xlu0 %1161, %v386
          %v1163 = vpop.permute.xlu0 %1162
          %1165 = vset.pattern.permute.xlu0 1
          %1166 = vperm.xlu0 %1165, %v387
          %v1167 = vpop.permute.xlu0 %1166
          %1169 = vset.pattern.permute.xlu0 1
          %1170 = vperm.xlu0 %1169, %v388
          %v1171 = vpop.permute.xlu0 %1170
          %1173 = vset.pattern.permute.xlu0 1
          %1174 = vperm.xlu0 %1173, %v389
          %v1175 = vpop.permute.xlu0 %1174
          %1177 = vset.pattern.permute.xlu0 1
          %1178 = vperm.xlu0 %1177, %v390
          %v1179 = vpop.permute.xlu0 %1178
          %1181 = vset.pattern.permute.xlu0 1
          %1182 = vperm.xlu0 %1181, %v391
          %v1183 = vpop.permute.xlu0 %1182
          %1185 = vset.pattern.permute.xlu0 1
          %1186 = vperm.xlu0 %1185, %v392
          %v1187 = vpop.permute.xlu0 %1186
          %1189 = vset.pattern.permute.xlu0 1
          %1190 = vperm.xlu0 %1189, %v393
          %v1191 = vpop.permute.xlu0 %1190
          %1193 = vset.pattern.permute.xlu0 1
          %1194 = vperm.xlu0 %1193, %v394
          %v1195 = vpop.permute.xlu0 %1194
          %1197 = vset.pattern.permute.xlu0 1
          %1198 = vperm.xlu0 %1197, %v395
          %v1199 = vpop.permute.xlu0 %1198
          %1201 = vset.pattern.permute.xlu0 1
          %1202 = vperm.xlu0 %1201, %v396
          %v1203 = vpop.permute.xlu0 %1202
          %1205 = vset.pattern.permute.xlu0 1
          %1206 = vperm.xlu0 %1205, %v397
          %v1207 = vpop.permute.xlu0 %1206
          %1209 = vset.pattern.permute.xlu0 1
          %1210 = vperm.xlu0 %1209, %v398
          %v1211 = vpop.permute.xlu0 %1210
          %1213 = vset.pattern.permute.xlu0 1
          %1214 = vperm.xlu0 %1213, %v399
          %v1215 = vpop.permute.xlu0 %1214
          %1217 = vset.pattern.permute.xlu0 1
          %1218 = vperm.xlu0 %1217, %v400
          %v1219 = vpop.permute.xlu0 %1218
          %1221 = vset.pattern.permute.xlu0 1
          %1222 = vperm.xlu0 %1221, %v401
          %v1223 = vpop.permute.xlu0 %1222
          %1225 = vset.pattern.permute.xlu0 1
          %1226 = vperm.xlu0 %1225, %v402
          %v1227 = vpop.permute.xlu0 %1226
          %1229 = vset.pattern.permute.xlu0 1
          %1230 = vperm.xlu0 %1229, %v403
          %v1231 = vpop.permute.xlu0 %1230
          %1233 = vset.pattern.permute.xlu0 1
          %1234 = vperm.xlu0 %1233, %v404
          %v1235 = vpop.permute.xlu0 %1234
          %1237 = vset.pattern.permute.xlu0 1
          %1238 = vperm.xlu0 %1237, %v405
          %v1239 = vpop.permute.xlu0 %1238
          %1241 = vset.pattern.permute.xlu0 1
          %1242 = vperm.xlu0 %1241, %v406
          %v1243 = vpop.permute.xlu0 %1242
          %1245 = vset.pattern.permute.xlu0 1
          %1246 = vperm.xlu0 %1245, %v407
          %v1247 = vpop.permute.xlu0 %1246
          %1249 = vset.pattern.permute.xlu0 1
          %1250 = vperm.xlu0 %1249, %v408
          %v1251 = vpop.permute.xlu0 %1250
          %1253 = vset.pattern.permute.xlu0 1
          %1254 = vperm.xlu0 %1253, %v409
          %v1255 = vpop.permute.xlu0 %1254
          %1257 = vset.pattern.permute.xlu0 1
          %1258 = vperm.xlu0 %1257, %v410
          %v1259 = vpop.permute.xlu0 %1258
          %1261 = vset.pattern.permute.xlu0 1
          %1262 = vperm.xlu0 %1261, %v411
          %v1263 = vpop.permute.xlu0 %1262
          %1265 = vset.pattern.permute.xlu0 1
          %1266 = vperm.xlu0 %1265, %v412
          %v1267 = vpop.permute.xlu0 %1266
          %1269 = vset.pattern.permute.xlu0 1
          %1270 = vperm.xlu0 %1269, %v413
          %v1271 = vpop.permute.xlu0 %1270
          %1273 = vset.pattern.permute.xlu0 1
          %1274 = vperm.xlu0 %1273, %v414
          %v1275 = vpop.permute.xlu0 %1274
          %1277 = vset.pattern.permute.xlu0 1
          %1278 = vperm.xlu0 %1277, %v415
          %v1279 = vpop.permute.xlu0 %1278
          %1281 = vset.pattern.permute.xlu0 1
          %1282 = vperm.xlu0 %1281, %v416
          %v1283 = vpop.permute.xlu0 %1282
          %1285 = vset.pattern.permute.xlu0 1
          %1286 = vperm.xlu0 %1285, %v417
          %v1287 = vpop.permute.xlu0 %1286
          %1289 = vset.pattern.permute.xlu0 1
          %1290 = vperm.xlu0 %1289, %v418
          %v1291 = vpop.permute.xlu0 %1290
          %1293 = vset.pattern.permute.xlu0 1
          %1294 = vperm.xlu0 %1293, %v419
          %v1295 = vpop.permute.xlu0 %1294
          %1297 = vset.pattern.permute.xlu0 1
          %1298 = vperm.xlu0 %1297, %v420
          %v1299 = vpop.permute.xlu0 %1298
          %1301 = vset.pattern.permute.xlu0 1
          %1302 = vperm.xlu0 %1301, %v421
          %v1303 = vpop.permute.xlu0 %1302
          %1305 = vset.pattern.permute.xlu0 1
          %1306 = vperm.xlu0 %1305, %v422
          %v1307 = vpop.permute.xlu0 %1306
          %1309 = vset.pattern.permute.xlu0 1
          %1310 = vperm.xlu0 %1309, %v423
          %v1311 = vpop.permute.xlu0 %1310
          %1313 = vset.pattern.permute.xlu0 1
          %1314 = vperm.xlu0 %1313, %v424
          %v1315 = vpop.permute.xlu0 %1314
          %1317 = vset.pattern.permute.xlu0 1
          %1318 = vperm.xlu0 %1317, %v425
          %v1319 = vpop.permute.xlu0 %1318
          %1321 = vset.pattern.permute.xlu0 1
          %1322 = vperm.xlu0 %1321, %v426
          %v1323 = vpop.permute.xlu0 %1322
          %1325 = vset.pattern.permute.xlu0 1
          %1326 = vperm.xlu0 %1325, %v427
          %v1327 = vpop.permute.xlu0 %1326
          %1329 = vset.pattern.permute.xlu0 1
          %1330 = vperm.xlu0 %1329, %v428
          %v1331 = vpop.permute.xlu0 %1330
          %1333 = vset.pattern.permute.xlu0 1
          %1334 = vperm.xlu0 %1333, %v429
          %v1335 = vpop.permute.xlu0 %1334
          %1337 = vset.pattern.permute.xlu0 1
          %1338 = vperm.xlu0 %1337, %v430
          %v1339 = vpop.permute.xlu0 %1338
          %1341 = vset.pattern.permute.xlu0 1
          %1342 = vperm.xlu0 %1341, %v431
          %v1343 = vpop.permute.xlu0 %1342
          %1345 = vset.pattern.permute.xlu0 1
          %1346 = vperm.xlu0 %1345, %v432
          %v1347 = vpop.permute.xlu0 %1346
          %1349 = vset.pattern.permute.xlu0 1
          %1350 = vperm.xlu0 %1349, %v433
          %v1351 = vpop.permute.xlu0 %1350
          %1353 = vset.pattern.permute.xlu0 1
          %1354 = vperm.xlu0 %1353, %v434
          %v1355 = vpop.permute.xlu0 %1354
          %1357 = vset.pattern.permute.xlu0 1
          %1358 = vperm.xlu0 %1357, %v435
          %v1359 = vpop.permute.xlu0 %1358
          %1361 = vset.pattern.permute.xlu0 1
          %1362 = vperm.xlu0 %1361, %v436
          %v1363 = vpop.permute.xlu0 %1362
          %1365 = vset.pattern.permute.xlu0 1
          %1366 = vperm.xlu0 %1365, %v437
          %v1367 = vpop.permute.xlu0 %1366
          %1369 = vset.pattern.permute.xlu0 1
          %1370 = vperm.xlu0 %1369, %v438
          %v1371 = vpop.permute.xlu0 %1370
          %1373 = vset.pattern.permute.xlu0 1
          %1374 = vperm.xlu0 %1373, %v439
          %v1375 = vpop.permute.xlu0 %1374
          %1377 = vset.pattern.permute.xlu0 1
          %1378 = vperm.xlu0 %1377, %v440
          %v1379 = vpop.permute.xlu0 %1378
          %1381 = vset.pattern.permute.xlu0 1
          %1382 = vperm.xlu0 %1381, %v441
          %v1383 = vpop.permute.xlu0 %1382
          %1385 = vset.pattern.permute.xlu0 1
          %1386 = vperm.xlu0 %1385, %v442
          %v1387 = vpop.permute.xlu0 %1386
          %1389 = vset.pattern.permute.xlu0 1
          %1390 = vperm.xlu0 %1389, %v443
          %v1391 = vpop.permute.xlu0 %1390
          %1393 = vset.pattern.permute.xlu0 1
          %1394 = vperm.xlu0 %1393, %v444
          %v1395 = vpop.permute.xlu0 %1394
          %1397 = vset.pattern.permute.xlu0 1
          %1398 = vperm.xlu0 %1397, %v445
          %v1399 = vpop.permute.xlu0 %1398
          %1401 = vset.pattern.permute.xlu0 1
          %1402 = vperm.xlu0 %1401, %v446
          %v1403 = vpop.permute.xlu0 %1402
          %1405 = vset.pattern.permute.xlu0 1
          %1406 = vperm.xlu0 %1405, %v447
          %v1407 = vpop.permute.xlu0 %1406
          %1409 = vset.pattern.permute.xlu0 1
          %1410 = vperm.xlu0 %1409, %v448
          %v1411 = vpop.permute.xlu0 %1410
          %v1413 = vperm.slane %v1156, 0
          %v1414 = vsub.f32 %v1159, %v1413
          %v1415 = vsub.f32 %v1163, %v1413
          %v1416 = vsub.f32 %v1167, %v1413
          %v1417 = vsub.f32 %v1171, %v1413
          %v1418 = vsub.f32 %v1175, %v1413
          %v1419 = vsub.f32 %v1179, %v1413
          %v1420 = vsub.f32 %v1183, %v1413
          %v1421 = vsub.f32 %v1187, %v1413
          %v1422 = vsub.f32 %v1191, %v1413
          %v1423 = vsub.f32 %v1195, %v1413
          %v1424 = vsub.f32 %v1199, %v1413
          %v1425 = vsub.f32 %v1203, %v1413
          %v1426 = vsub.f32 %v1207, %v1413
          %v1427 = vsub.f32 %v1211, %v1413
          %v1428 = vsub.f32 %v1215, %v1413
          %v1429 = vsub.f32 %v1219, %v1413
          %v1430 = vsub.f32 %v1223, %v1413
          %v1431 = vsub.f32 %v1227, %v1413
          %v1432 = vsub.f32 %v1231, %v1413
          %v1433 = vsub.f32 %v1235, %v1413
          %v1434 = vsub.f32 %v1239, %v1413
          %v1435 = vsub.f32 %v1243, %v1413
          %v1436 = vsub.f32 %v1247, %v1413
          %v1437 = vsub.f32 %v1251, %v1413
          %v1438 = vsub.f32 %v1255, %v1413
          %v1439 = vsub.f32 %v1259, %v1413
          %v1440 = vsub.f32 %v1263, %v1413
          %v1441 = vsub.f32 %v1267, %v1413
          %v1442 = vsub.f32 %v1271, %v1413
          %v1443 = vsub.f32 %v1275, %v1413
          %v1444 = vsub.f32 %v1279, %v1413
          %v1445 = vsub.f32 %v1283, %v1413
          %v1446 = vsub.f32 %v1287, %v1413
          %v1447 = vsub.f32 %v1291, %v1413
          %v1448 = vsub.f32 %v1295, %v1413
          %v1449 = vsub.f32 %v1299, %v1413
          %v1450 = vsub.f32 %v1303, %v1413
          %v1451 = vsub.f32 %v1307, %v1413
          %v1452 = vsub.f32 %v1311, %v1413
          %v1453 = vsub.f32 %v1315, %v1413
          %v1454 = vsub.f32 %v1319, %v1413
          %v1455 = vsub.f32 %v1323, %v1413
          %v1456 = vsub.f32 %v1327, %v1413
          %v1457 = vsub.f32 %v1331, %v1413
          %v1458 = vsub.f32 %v1335, %v1413
          %v1459 = vsub.f32 %v1339, %v1413
          %v1460 = vsub.f32 %v1343, %v1413
          %v1461 = vsub.f32 %v1347, %v1413
          %v1462 = vsub.f32 %v1351, %v1413
          %v1463 = vsub.f32 %v1355, %v1413
          %v1464 = vsub.f32 %v1359, %v1413
          %v1465 = vsub.f32 %v1363, %v1413
          %v1466 = vsub.f32 %v1367, %v1413
          %v1467 = vsub.f32 %v1371, %v1413
          %v1468 = vsub.f32 %v1375, %v1413
          %v1469 = vsub.f32 %v1379, %v1413
          %v1470 = vsub.f32 %v1383, %v1413
          %v1471 = vsub.f32 %v1387, %v1413
          %v1472 = vsub.f32 %v1391, %v1413
          %v1473 = vsub.f32 %v1395, %v1413
          %v1474 = vsub.f32 %v1399, %v1413
          %v1475 = vsub.f32 %v1403, %v1413
          %v1476 = vsub.f32 %v1407, %v1413
          %v1477 = vsub.f32 %v1411, %v1413
          %v1478 = vld [vmem:[%s289 + $0x2] sm:$0x1]
          %1479 = vset.pattern.permute.xlu0 2
          %1480 = vperm.xlu0 %1479, %v385
          %v1481 = vpop.permute.xlu0 %1480
          %1483 = vset.pattern.permute.xlu0 2
          %1484 = vperm.xlu0 %1483, %v386
          %v1485 = vpop.permute.xlu0 %1484
          %1487 = vset.pattern.permute.xlu0 2
          %1488 = vperm.xlu0 %1487, %v387
          %v1489 = vpop.permute.xlu0 %1488
          %1491 = vset.pattern.permute.xlu0 2
          %1492 = vperm.xlu0 %1491, %v388
          %v1493 = vpop.permute.xlu0 %1492
          %1495 = vset.pattern.permute.xlu0 2
          %1496 = vperm.xlu0 %1495, %v389
          %v1497 = vpop.permute.xlu0 %1496
          %1499 = vset.pattern.permute.xlu0 2
          %1500 = vperm.xlu0 %1499, %v390
          %v1501 = vpop.permute.xlu0 %1500
          %1503 = vset.pattern.permute.xlu0 2
          %1504 = vperm.xlu0 %1503, %v391
          %v1505 = vpop.permute.xlu0 %1504
          %1507 = vset.pattern.permute.xlu0 2
          %1508 = vperm.xlu0 %1507, %v392
          %v1509 = vpop.permute.xlu0 %1508
          %1511 = vset.pattern.permute.xlu0 2
          %1512 = vperm.xlu0 %1511, %v393
          %v1513 = vpop.permute.xlu0 %1512
          %1515 = vset.pattern.permute.xlu0 2
          %1516 = vperm.xlu0 %1515, %v394
          %v1517 = vpop.permute.xlu0 %1516
          %1519 = vset.pattern.permute.xlu0 2
          %1520 = vperm.xlu0 %1519, %v395
          %v1521 = vpop.permute.xlu0 %1520
          %1523 = vset.pattern.permute.xlu0 2
          %1524 = vperm.xlu0 %1523, %v396
          %v1525 = vpop.permute.xlu0 %1524
          %1527 = vset.pattern.permute.xlu0 2
          %1528 = vperm.xlu0 %1527, %v397
          %v1529 = vpop.permute.xlu0 %1528
          %1531 = vset.pattern.permute.xlu0 2
          %1532 = vperm.xlu0 %1531, %v398
          %v1533 = vpop.permute.xlu0 %1532
          %1535 = vset.pattern.permute.xlu0 2
          %1536 = vperm.xlu0 %1535, %v399
          %v1537 = vpop.permute.xlu0 %1536
          %1539 = vset.pattern.permute.xlu0 2
          %1540 = vperm.xlu0 %1539, %v400
          %v1541 = vpop.permute.xlu0 %1540
          %1543 = vset.pattern.permute.xlu0 2
          %1544 = vperm.xlu0 %1543, %v401
          %v1545 = vpop.permute.xlu0 %1544
          %1547 = vset.pattern.permute.xlu0 2
          %1548 = vperm.xlu0 %1547, %v402
          %v1549 = vpop.permute.xlu0 %1548
          %1551 = vset.pattern.permute.xlu0 2
          %1552 = vperm.xlu0 %1551, %v403
          %v1553 = vpop.permute.xlu0 %1552
          %1555 = vset.pattern.permute.xlu0 2
          %1556 = vperm.xlu0 %1555, %v404
          %v1557 = vpop.permute.xlu0 %1556
          %1559 = vset.pattern.permute.xlu0 2
          %1560 = vperm.xlu0 %1559, %v405
          %v1561 = vpop.permute.xlu0 %1560
          %1563 = vset.pattern.permute.xlu0 2
          %1564 = vperm.xlu0 %1563, %v406
          %v1565 = vpop.permute.xlu0 %1564
          %1567 = vset.pattern.permute.xlu0 2
          %1568 = vperm.xlu0 %1567, %v407
          %v1569 = vpop.permute.xlu0 %1568
          %1571 = vset.pattern.permute.xlu0 2
          %1572 = vperm.xlu0 %1571, %v408
          %v1573 = vpop.permute.xlu0 %1572
          %1575 = vset.pattern.permute.xlu0 2
          %1576 = vperm.xlu0 %1575, %v409
          %v1577 = vpop.permute.xlu0 %1576
          %1579 = vset.pattern.permute.xlu0 2
          %1580 = vperm.xlu0 %1579, %v410
          %v1581 = vpop.permute.xlu0 %1580
          %1583 = vset.pattern.permute.xlu0 2
          %1584 = vperm.xlu0 %1583, %v411
          %v1585 = vpop.permute.xlu0 %1584
          %1587 = vset.pattern.permute.xlu0 2
          %1588 = vperm.xlu0 %1587, %v412
          %v1589 = vpop.permute.xlu0 %1588
          %1591 = vset.pattern.permute.xlu0 2
          %1592 = vperm.xlu0 %1591, %v413
          %v1593 = vpop.permute.xlu0 %1592
          %1595 = vset.pattern.permute.xlu0 2
          %1596 = vperm.xlu0 %1595, %v414
          %v1597 = vpop.permute.xlu0 %1596
          %1599 = vset.pattern.permute.xlu0 2
          %1600 = vperm.xlu0 %1599, %v415
          %v1601 = vpop.permute.xlu0 %1600
          %1603 = vset.pattern.permute.xlu0 2
          %1604 = vperm.xlu0 %1603, %v416
          %v1605 = vpop.permute.xlu0 %1604
          %1607 = vset.pattern.permute.xlu0 2
          %1608 = vperm.xlu0 %1607, %v417
          %v1609 = vpop.permute.xlu0 %1608
          %1611 = vset.pattern.permute.xlu0 2
          %1612 = vperm.xlu0 %1611, %v418
          %v1613 = vpop.permute.xlu0 %1612
          %1615 = vset.pattern.permute.xlu0 2
          %1616 = vperm.xlu0 %1615, %v419
          %v1617 = vpop.permute.xlu0 %1616
          %1619 = vset.pattern.permute.xlu0 2
          %1620 = vperm.xlu0 %1619, %v420
          %v1621 = vpop.permute.xlu0 %1620
          %1623 = vset.pattern.permute.xlu0 2
          %1624 = vperm.xlu0 %1623, %v421
          %v1625 = vpop.permute.xlu0 %1624
          %1627 = vset.pattern.permute.xlu0 2
          %1628 = vperm.xlu0 %1627, %v422
          %v1629 = vpop.permute.xlu0 %1628
          %1631 = vset.pattern.permute.xlu0 2
          %1632 = vperm.xlu0 %1631, %v423
          %v1633 = vpop.permute.xlu0 %1632
          %1635 = vset.pattern.permute.xlu0 2
          %1636 = vperm.xlu0 %1635, %v424
          %v1637 = vpop.permute.xlu0 %1636
          %1639 = vset.pattern.permute.xlu0 2
          %1640 = vperm.xlu0 %1639, %v425
          %v1641 = vpop.permute.xlu0 %1640
          %1643 = vset.pattern.permute.xlu0 2
          %1644 = vperm.xlu0 %1643, %v426
          %v1645 = vpop.permute.xlu0 %1644
          %1647 = vset.pattern.permute.xlu0 2
          %1648 = vperm.xlu0 %1647, %v427
          %v1649 = vpop.permute.xlu0 %1648
          %1651 = vset.pattern.permute.xlu0 2
          %1652 = vperm.xlu0 %1651, %v428
          %v1653 = vpop.permute.xlu0 %1652
          %1655 = vset.pattern.permute.xlu0 2
          %1656 = vperm.xlu0 %1655, %v429
          %v1657 = vpop.permute.xlu0 %1656
          %1659 = vset.pattern.permute.xlu0 2
          %1660 = vperm.xlu0 %1659, %v430
          %v1661 = vpop.permute.xlu0 %1660
          %1663 = vset.pattern.permute.xlu0 2
          %1664 = vperm.xlu0 %1663, %v431
          %v1665 = vpop.permute.xlu0 %1664
          %1667 = vset.pattern.permute.xlu0 2
          %1668 = vperm.xlu0 %1667, %v432
          %v1669 = vpop.permute.xlu0 %1668
          %1671 = vset.pattern.permute.xlu0 2
          %1672 = vperm.xlu0 %1671, %v433
          %v1673 = vpop.permute.xlu0 %1672
          %1675 = vset.pattern.permute.xlu0 2
          %1676 = vperm.xlu0 %1675, %v434
          %v1677 = vpop.permute.xlu0 %1676
          %1679 = vset.pattern.permute.xlu0 2
          %1680 = vperm.xlu0 %1679, %v435
          %v1681 = vpop.permute.xlu0 %1680
          %1683 = vset.pattern.permute.xlu0 2
          %1684 = vperm.xlu0 %1683, %v436
          %v1685 = vpop.permute.xlu0 %1684
          %1687 = vset.pattern.permute.xlu0 2
          %1688 = vperm.xlu0 %1687, %v437
          %v1689 = vpop.permute.xlu0 %1688
          %1691 = vset.pattern.permute.xlu0 2
          %1692 = vperm.xlu0 %1691, %v438
          %v1693 = vpop.permute.xlu0 %1692
          %1695 = vset.pattern.permute.xlu0 2
          %1696 = vperm.xlu0 %1695, %v439
          %v1697 = vpop.permute.xlu0 %1696
          %1699 = vset.pattern.permute.xlu0 2
          %1700 = vperm.xlu0 %1699, %v440
          %v1701 = vpop.permute.xlu0 %1700
          %1703 = vset.pattern.permute.xlu0 2
          %1704 = vperm.xlu0 %1703, %v441
          %v1705 = vpop.permute.xlu0 %1704
          %1707 = vset.pattern.permute.xlu0 2
          %1708 = vperm.xlu0 %1707, %v442
          %v1709 = vpop.permute.xlu0 %1708
          %1711 = vset.pattern.permute.xlu0 2
          %1712 = vperm.xlu0 %1711, %v443
          %v1713 = vpop.permute.xlu0 %1712
          %1715 = vset.pattern.permute.xlu0 2
          %1716 = vperm.xlu0 %1715, %v444
          %v1717 = vpop.permute.xlu0 %1716
          %1719 = vset.pattern.permute.xlu0 2
          %1720 = vperm.xlu0 %1719, %v445
          %v1721 = vpop.permute.xlu0 %1720
          %1723 = vset.pattern.permute.xlu0 2
          %1724 = vperm.xlu0 %1723, %v446
          %v1725 = vpop.permute.xlu0 %1724
          %1727 = vset.pattern.permute.xlu0 2
          %1728 = vperm.xlu0 %1727, %v447
          %v1729 = vpop.permute.xlu0 %1728
          %1731 = vset.pattern.permute.xlu0 2
          %1732 = vperm.xlu0 %1731, %v448
          %v1733 = vpop.permute.xlu0 %1732
          %v1735 = vperm.slane %v1478, 0
          %v1736 = vsub.f32 %v1481, %v1735
          %v1737 = vsub.f32 %v1485, %v1735
          %v1738 = vsub.f32 %v1489, %v1735
          %v1739 = vsub.f32 %v1493, %v1735
          %v1740 = vsub.f32 %v1497, %v1735
          %v1741 = vsub.f32 %v1501, %v1735
          %v1742 = vsub.f32 %v1505, %v1735
          %v1743 = vsub.f32 %v1509, %v1735
          %v1744 = vsub.f32 %v1513, %v1735
          %v1745 = vsub.f32 %v1517, %v1735
          %v1746 = vsub.f32 %v1521, %v1735
          %v1747 = vsub.f32 %v1525, %v1735
          %v1748 = vsub.f32 %v1529, %v1735
          %v1749 = vsub.f32 %v1533, %v1735
          %v1750 = vsub.f32 %v1537, %v1735
          %v1751 = vsub.f32 %v1541, %v1735
          %v1752 = vsub.f32 %v1545, %v1735
          %v1753 = vsub.f32 %v1549, %v1735
          %v1754 = vsub.f32 %v1553, %v1735
          %v1755 = vsub.f32 %v1557, %v1735
          %v1756 = vsub.f32 %v1561, %v1735
          %v1757 = vsub.f32 %v1565, %v1735
          %v1758 = vsub.f32 %v1569, %v1735
          %v1759 = vsub.f32 %v1573, %v1735
          %v1760 = vsub.f32 %v1577, %v1735
          %v1761 = vsub.f32 %v1581, %v1735
          %v1762 = vsub.f32 %v1585, %v1735
          %v1763 = vsub.f32 %v1589, %v1735
          %v1764 = vsub.f32 %v1593, %v1735
          %v1765 = vsub.f32 %v1597, %v1735
          %v1766 = vsub.f32 %v1601, %v1735
          %v1767 = vsub.f32 %v1605, %v1735
          %v1768 = vsub.f32 %v1609, %v1735
          %v1769 = vsub.f32 %v1613, %v1735
          %v1770 = vsub.f32 %v1617, %v1735
          %v1771 = vsub.f32 %v1621, %v1735
          %v1772 = vsub.f32 %v1625, %v1735
          %v1773 = vsub.f32 %v1629, %v1735
          %v1774 = vsub.f32 %v1633, %v1735
          %v1775 = vsub.f32 %v1637, %v1735
          %v1776 = vsub.f32 %v1641, %v1735
          %v1777 = vsub.f32 %v1645, %v1735
          %v1778 = vsub.f32 %v1649, %v1735
          %v1779 = vsub.f32 %v1653, %v1735
          %v1780 = vsub.f32 %v1657, %v1735
          %v1781 = vsub.f32 %v1661, %v1735
          %v1782 = vsub.f32 %v1665, %v1735
          %v1783 = vsub.f32 %v1669, %v1735
          %v1784 = vsub.f32 %v1673, %v1735
          %v1785 = vsub.f32 %v1677, %v1735
          %v1786 = vsub.f32 %v1681, %v1735
          %v1787 = vsub.f32 %v1685, %v1735
          %v1788 = vsub.f32 %v1689, %v1735
          %v1789 = vsub.f32 %v1693, %v1735
          %v1790 = vsub.f32 %v1697, %v1735
          %v1791 = vsub.f32 %v1701, %v1735
          %v1792 = vsub.f32 %v1705, %v1735
          %v1793 = vsub.f32 %v1709, %v1735
          %v1794 = vsub.f32 %v1713, %v1735
          %v1795 = vsub.f32 %v1717, %v1735
          %v1796 = vsub.f32 %v1721, %v1735
          %v1797 = vsub.f32 %v1725, %v1735
          %v1798 = vsub.f32 %v1729, %v1735
          %v1799 = vsub.f32 %v1733, %v1735
          loop: start=0, step=1, limit=32
          $region49: #{field_conv.1} parent=47 // loop_pre_header
            _
          $region50: #{field_conv.1} parent=47 // loop_header
            %s1801 = sphi 0, %s1805
            %p1802 = scmp.ge.s32.totalorder %s1801, 32
          $region51: #{field_conv.1} parent=47 // loop_header_branch
            %1804 = sbr.rel (%p1802) target = $region55
          $region52: #{field_conv.1} parent=47 // loop_body
            %s1806 = smul.u32 %s1801, 4
            %s1807 = scalar_lea.vmem %s2, %s1806
            %v1808 = vld [vmem:[%s1807] sm:$0x7]
            %v1809 = vperm.slane %v1808, 0
            %v1810 = vsub.f32 %v1092, %v1809
            %v1811 = vsub.f32 %v1093, %v1809
            %v1812 = vsub.f32 %v1094, %v1809
            %v1813 = vsub.f32 %v1095, %v1809
            %v1814 = vsub.f32 %v1096, %v1809
            %v1815 = vsub.f32 %v1097, %v1809
            %v1816 = vsub.f32 %v1098, %v1809
            %v1817 = vsub.f32 %v1099, %v1809
            %v1818 = vsub.f32 %v1100, %v1809
            %v1819 = vsub.f32 %v1101, %v1809
            %v1820 = vsub.f32 %v1102, %v1809
            %v1821 = vsub.f32 %v1103, %v1809
            %v1822 = vsub.f32 %v1104, %v1809
            %v1823 = vsub.f32 %v1105, %v1809
            %v1824 = vsub.f32 %v1106, %v1809
            %v1825 = vsub.f32 %v1107, %v1809
            %v1826 = vsub.f32 %v1108, %v1809
            %v1827 = vsub.f32 %v1109, %v1809
            %v1828 = vsub.f32 %v1110, %v1809
            %v1829 = vsub.f32 %v1111, %v1809
            %v1830 = vsub.f32 %v1112, %v1809
            %v1831 = vsub.f32 %v1113, %v1809
            %v1832 = vsub.f32 %v1114, %v1809
            %v1833 = vsub.f32 %v1115, %v1809
            %v1834 = vsub.f32 %v1116, %v1809
            %v1835 = vsub.f32 %v1117, %v1809
            %v1836 = vsub.f32 %v1118, %v1809
            %v1837 = vsub.f32 %v1119, %v1809
            %v1838 = vsub.f32 %v1120, %v1809
            %v1839 = vsub.f32 %v1121, %v1809
            %v1840 = vsub.f32 %v1122, %v1809
            %v1841 = vsub.f32 %v1123, %v1809
            %v1842 = vsub.f32 %v1124, %v1809
            %v1843 = vsub.f32 %v1125, %v1809
            %v1844 = vsub.f32 %v1126, %v1809
            %v1845 = vsub.f32 %v1127, %v1809
            %v1846 = vsub.f32 %v1128, %v1809
            %v1847 = vsub.f32 %v1129, %v1809
            %v1848 = vsub.f32 %v1130, %v1809
            %v1849 = vsub.f32 %v1131, %v1809
            %v1850 = vsub.f32 %v1132, %v1809
            %v1851 = vsub.f32 %v1133, %v1809
            %v1852 = vsub.f32 %v1134, %v1809
            %v1853 = vsub.f32 %v1135, %v1809
            %v1854 = vsub.f32 %v1136, %v1809
            %v1855 = vsub.f32 %v1137, %v1809
            %v1856 = vsub.f32 %v1138, %v1809
            %v1857 = vsub.f32 %v1139, %v1809
            %v1858 = vsub.f32 %v1140, %v1809
            %v1859 = vsub.f32 %v1141, %v1809
            %v1860 = vsub.f32 %v1142, %v1809
            %v1861 = vsub.f32 %v1143, %v1809
            %v1862 = vsub.f32 %v1144, %v1809
            %v1863 = vsub.f32 %v1145, %v1809
            %v1864 = vsub.f32 %v1146, %v1809
            %v1865 = vsub.f32 %v1147, %v1809
            %v1866 = vsub.f32 %v1148, %v1809
            %v1867 = vsub.f32 %v1149, %v1809
            %v1868 = vsub.f32 %v1150, %v1809
            %v1869 = vsub.f32 %v1151, %v1809
            %v1870 = vsub.f32 %v1152, %v1809
            %v1871 = vsub.f32 %v1153, %v1809
            %v1872 = vsub.f32 %v1154, %v1809
            %v1873 = vsub.f32 %v1155, %v1809
            %v1874 = vperm.slane %v1808, 1
            %v1875 = vsub.f32 %v1414, %v1874
            %v1876 = vsub.f32 %v1415, %v1874
            %v1877 = vsub.f32 %v1416, %v1874
            %v1878 = vsub.f32 %v1417, %v1874
            %v1879 = vsub.f32 %v1418, %v1874
            %v1880 = vsub.f32 %v1419, %v1874
            %v1881 = vsub.f32 %v1420, %v1874
            %v1882 = vsub.f32 %v1421, %v1874
            %v1883 = vsub.f32 %v1422, %v1874
            %v1884 = vsub.f32 %v1423, %v1874
            %v1885 = vsub.f32 %v1424, %v1874
            %v1886 = vsub.f32 %v1425, %v1874
            %v1887 = vsub.f32 %v1426, %v1874
            %v1888 = vsub.f32 %v1427, %v1874
            %v1889 = vsub.f32 %v1428, %v1874
            %v1890 = vsub.f32 %v1429, %v1874
            %v1891 = vsub.f32 %v1430, %v1874
            %v1892 = vsub.f32 %v1431, %v1874
            %v1893 = vsub.f32 %v1432, %v1874
            %v1894 = vsub.f32 %v1433, %v1874
            %v1895 = vsub.f32 %v1434, %v1874
            %v1896 = vsub.f32 %v1435, %v1874
            %v1897 = vsub.f32 %v1436, %v1874
            %v1898 = vsub.f32 %v1437, %v1874
            %v1899 = vsub.f32 %v1438, %v1874
            %v1900 = vsub.f32 %v1439, %v1874
            %v1901 = vsub.f32 %v1440, %v1874
            %v1902 = vsub.f32 %v1441, %v1874
            %v1903 = vsub.f32 %v1442, %v1874
            %v1904 = vsub.f32 %v1443, %v1874
            %v1905 = vsub.f32 %v1444, %v1874
            %v1906 = vsub.f32 %v1445, %v1874
            %v1907 = vsub.f32 %v1446, %v1874
            %v1908 = vsub.f32 %v1447, %v1874
            %v1909 = vsub.f32 %v1448, %v1874
            %v1910 = vsub.f32 %v1449, %v1874
            %v1911 = vsub.f32 %v1450, %v1874
            %v1912 = vsub.f32 %v1451, %v1874
            %v1913 = vsub.f32 %v1452, %v1874
            %v1914 = vsub.f32 %v1453, %v1874
            %v1915 = vsub.f32 %v1454, %v1874
            %v1916 = vsub.f32 %v1455, %v1874
            %v1917 = vsub.f32 %v1456, %v1874
            %v1918 = vsub.f32 %v1457, %v1874
            %v1919 = vsub.f32 %v1458, %v1874
            %v1920 = vsub.f32 %v1459, %v1874
            %v1921 = vsub.f32 %v1460, %v1874
            %v1922 = vsub.f32 %v1461, %v1874
            %v1923 = vsub.f32 %v1462, %v1874
            %v1924 = vsub.f32 %v1463, %v1874
            %v1925 = vsub.f32 %v1464, %v1874
            %v1926 = vsub.f32 %v1465, %v1874
            %v1927 = vsub.f32 %v1466, %v1874
            %v1928 = vsub.f32 %v1467, %v1874
            %v1929 = vsub.f32 %v1468, %v1874
            %v1930 = vsub.f32 %v1469, %v1874
            %v1931 = vsub.f32 %v1470, %v1874
            %v1932 = vsub.f32 %v1471, %v1874
            %v1933 = vsub.f32 %v1472, %v1874
            %v1934 = vsub.f32 %v1473, %v1874
            %v1935 = vsub.f32 %v1474, %v1874
            %v1936 = vsub.f32 %v1475, %v1874
            %v1937 = vsub.f32 %v1476, %v1874
            %v1938 = vsub.f32 %v1477, %v1874
            %v1939 = vperm.slane %v1808, 2
            %v1940 = vsub.f32 %v1736, %v1939
            %v1941 = vsub.f32 %v1737, %v1939
            %v1942 = vsub.f32 %v1738, %v1939
            %v1943 = vsub.f32 %v1739, %v1939
            %v1944 = vsub.f32 %v1740, %v1939
            %v1945 = vsub.f32 %v1741, %v1939
            %v1946 = vsub.f32 %v1742, %v1939
            %v1947 = vsub.f32 %v1743, %v1939
            %v1948 = vsub.f32 %v1744, %v1939
            %v1949 = vsub.f32 %v1745, %v1939
            %v1950 = vsub.f32 %v1746, %v1939
            %v1951 = vsub.f32 %v1747, %v1939
            %v1952 = vsub.f32 %v1748, %v1939
            %v1953 = vsub.f32 %v1749, %v1939
            %v1954 = vsub.f32 %v1750, %v1939
            %v1955 = vsub.f32 %v1751, %v1939
            %v1956 = vsub.f32 %v1752, %v1939
            %v1957 = vsub.f32 %v1753, %v1939
            %v1958 = vsub.f32 %v1754, %v1939
            %v1959 = vsub.f32 %v1755, %v1939
            %v1960 = vsub.f32 %v1756, %v1939
            %v1961 = vsub.f32 %v1757, %v1939
            %v1962 = vsub.f32 %v1758, %v1939
            %v1963 = vsub.f32 %v1759, %v1939
            %v1964 = vsub.f32 %v1760, %v1939
            %v1965 = vsub.f32 %v1761, %v1939
            %v1966 = vsub.f32 %v1762, %v1939
            %v1967 = vsub.f32 %v1763, %v1939
            %v1968 = vsub.f32 %v1764, %v1939
            %v1969 = vsub.f32 %v1765, %v1939
            %v1970 = vsub.f32 %v1766, %v1939
            %v1971 = vsub.f32 %v1767, %v1939
            %v1972 = vsub.f32 %v1768, %v1939
            %v1973 = vsub.f32 %v1769, %v1939
            %v1974 = vsub.f32 %v1770, %v1939
            %v1975 = vsub.f32 %v1771, %v1939
            %v1976 = vsub.f32 %v1772, %v1939
            %v1977 = vsub.f32 %v1773, %v1939
            %v1978 = vsub.f32 %v1774, %v1939
            %v1979 = vsub.f32 %v1775, %v1939
            %v1980 = vsub.f32 %v1776, %v1939
            %v1981 = vsub.f32 %v1777, %v1939
            %v1982 = vsub.f32 %v1778, %v1939
            %v1983 = vsub.f32 %v1779, %v1939
            %v1984 = vsub.f32 %v1780, %v1939
            %v1985 = vsub.f32 %v1781, %v1939
            %v1986 = vsub.f32 %v1782, %v1939
            %v1987 = vsub.f32 %v1783, %v1939
            %v1988 = vsub.f32 %v1784, %v1939
            %v1989 = vsub.f32 %v1785, %v1939
            %v1990 = vsub.f32 %v1786, %v1939
            %v1991 = vsub.f32 %v1787, %v1939
            %v1992 = vsub.f32 %v1788, %v1939
            %v1993 = vsub.f32 %v1789, %v1939
            %v1994 = vsub.f32 %v1790, %v1939
            %v1995 = vsub.f32 %v1791, %v1939
            %v1996 = vsub.f32 %v1792, %v1939
            %v1997 = vsub.f32 %v1793, %v1939
            %v1998 = vsub.f32 %v1794, %v1939
            %v1999 = vsub.f32 %v1795, %v1939
            %v2000 = vsub.f32 %v1796, %v1939
            %v2001 = vsub.f32 %v1797, %v1939
            %v2002 = vsub.f32 %v1798, %v1939
            %v2003 = vsub.f32 %v1799, %v1939
            %v2004 = vmul.f32 %v1810, %v1810
            %v2005 = vmul.f32 %v1811, %v1811
            %v2006 = vmul.f32 %v1812, %v1812
            %v2007 = vmul.f32 %v1813, %v1813
            %v2008 = vmul.f32 %v1814, %v1814
            %v2009 = vmul.f32 %v1815, %v1815
            %v2010 = vmul.f32 %v1816, %v1816
            %v2011 = vmul.f32 %v1817, %v1817
            %v2012 = vmul.f32 %v1818, %v1818
            %v2013 = vmul.f32 %v1819, %v1819
            %v2014 = vmul.f32 %v1820, %v1820
            %v2015 = vmul.f32 %v1821, %v1821
            %v2016 = vmul.f32 %v1822, %v1822
            %v2017 = vmul.f32 %v1823, %v1823
            %v2018 = vmul.f32 %v1824, %v1824
            %v2019 = vmul.f32 %v1825, %v1825
            %v2020 = vmul.f32 %v1826, %v1826
            %v2021 = vmul.f32 %v1827, %v1827
            %v2022 = vmul.f32 %v1828, %v1828
            %v2023 = vmul.f32 %v1829, %v1829
            %v2024 = vmul.f32 %v1830, %v1830
            %v2025 = vmul.f32 %v1831, %v1831
            %v2026 = vmul.f32 %v1832, %v1832
            %v2027 = vmul.f32 %v1833, %v1833
            %v2028 = vmul.f32 %v1834, %v1834
            %v2029 = vmul.f32 %v1835, %v1835
            %v2030 = vmul.f32 %v1836, %v1836
            %v2031 = vmul.f32 %v1837, %v1837
            %v2032 = vmul.f32 %v1838, %v1838
            %v2033 = vmul.f32 %v1839, %v1839
            %v2034 = vmul.f32 %v1840, %v1840
            %v2035 = vmul.f32 %v1841, %v1841
            %v2036 = vmul.f32 %v1842, %v1842
            %v2037 = vmul.f32 %v1843, %v1843
            %v2038 = vmul.f32 %v1844, %v1844
            %v2039 = vmul.f32 %v1845, %v1845
            %v2040 = vmul.f32 %v1846, %v1846
            %v2041 = vmul.f32 %v1847, %v1847
            %v2042 = vmul.f32 %v1848, %v1848
            %v2043 = vmul.f32 %v1849, %v1849
            %v2044 = vmul.f32 %v1850, %v1850
            %v2045 = vmul.f32 %v1851, %v1851
            %v2046 = vmul.f32 %v1852, %v1852
            %v2047 = vmul.f32 %v1853, %v1853
            %v2048 = vmul.f32 %v1854, %v1854
            %v2049 = vmul.f32 %v1855, %v1855
            %v2050 = vmul.f32 %v1856, %v1856
            %v2051 = vmul.f32 %v1857, %v1857
            %v2052 = vmul.f32 %v1858, %v1858
            %v2053 = vmul.f32 %v1859, %v1859
            %v2054 = vmul.f32 %v1860, %v1860
            %v2055 = vmul.f32 %v1861, %v1861
            %v2056 = vmul.f32 %v1862, %v1862
            %v2057 = vmul.f32 %v1863, %v1863
            %v2058 = vmul.f32 %v1864, %v1864
            %v2059 = vmul.f32 %v1865, %v1865
            %v2060 = vmul.f32 %v1866, %v1866
            %v2061 = vmul.f32 %v1867, %v1867
            %v2062 = vmul.f32 %v1868, %v1868
            %v2063 = vmul.f32 %v1869, %v1869
            %v2064 = vmul.f32 %v1870, %v1870
            %v2065 = vmul.f32 %v1871, %v1871
            %v2066 = vmul.f32 %v1872, %v1872
            %v2067 = vmul.f32 %v1873, %v1873
            %v2068 = vmul.f32 %v1875, %v1875
            %v2069 = vmul.f32 %v1876, %v1876
            %v2070 = vmul.f32 %v1877, %v1877
            %v2071 = vmul.f32 %v1878, %v1878
            %v2072 = vmul.f32 %v1879, %v1879
            %v2073 = vmul.f32 %v1880, %v1880
            %v2074 = vmul.f32 %v1881, %v1881
            %v2075 = vmul.f32 %v1882, %v1882
            %v2076 = vmul.f32 %v1883, %v1883
            %v2077 = vmul.f32 %v1884, %v1884
            %v2078 = vmul.f32 %v1885, %v1885
            %v2079 = vmul.f32 %v1886, %v1886
            %v2080 = vmul.f32 %v1887, %v1887
            %v2081 = vmul.f32 %v1888, %v1888
            %v2082 = vmul.f32 %v1889, %v1889
            %v2083 = vmul.f32 %v1890, %v1890
            %v2084 = vmul.f32 %v1891, %v1891
            %v2085 = vmul.f32 %v1892, %v1892
            %v2086 = vmul.f32 %v1893, %v1893
            %v2087 = vmul.f32 %v1894, %v1894
            %v2088 = vmul.f32 %v1895, %v1895
            %v2089 = vmul.f32 %v1896, %v1896
            %v2090 = vmul.f32 %v1897, %v1897
            %v2091 = vmul.f32 %v1898, %v1898
            %v2092 = vmul.f32 %v1899, %v1899
            %v2093 = vmul.f32 %v1900, %v1900
            %v2094 = vmul.f32 %v1901, %v1901
            %v2095 = vmul.f32 %v1902, %v1902
            %v2096 = vmul.f32 %v1903, %v1903
            %v2097 = vmul.f32 %v1904, %v1904
            %v2098 = vmul.f32 %v1905, %v1905
            %v2099 = vmul.f32 %v1906, %v1906
            %v2100 = vmul.f32 %v1907, %v1907
            %v2101 = vmul.f32 %v1908, %v1908
            %v2102 = vmul.f32 %v1909, %v1909
            %v2103 = vmul.f32 %v1910, %v1910
            %v2104 = vmul.f32 %v1911, %v1911
            %v2105 = vmul.f32 %v1912, %v1912
            %v2106 = vmul.f32 %v1913, %v1913
            %v2107 = vmul.f32 %v1914, %v1914
            %v2108 = vmul.f32 %v1915, %v1915
            %v2109 = vmul.f32 %v1916, %v1916
            %v2110 = vmul.f32 %v1917, %v1917
            %v2111 = vmul.f32 %v1918, %v1918
            %v2112 = vmul.f32 %v1919, %v1919
            %v2113 = vmul.f32 %v1920, %v1920
            %v2114 = vmul.f32 %v1921, %v1921
            %v2115 = vmul.f32 %v1922, %v1922
            %v2116 = vmul.f32 %v1923, %v1923
            %v2117 = vmul.f32 %v1924, %v1924
            %v2118 = vmul.f32 %v1925, %v1925
            %v2119 = vmul.f32 %v1926, %v1926
            %v2120 = vmul.f32 %v1927, %v1927
            %v2121 = vmul.f32 %v1928, %v1928
            %v2122 = vmul.f32 %v1929, %v1929
            %v2123 = vmul.f32 %v1930, %v1930
            %v2124 = vmul.f32 %v1931, %v1931
            %v2125 = vmul.f32 %v1932, %v1932
            %v2126 = vmul.f32 %v1933, %v1933
            %v2127 = vmul.f32 %v1934, %v1934
            %v2128 = vmul.f32 %v1935, %v1935
            %v2129 = vmul.f32 %v1936, %v1936
            %v2130 = vmul.f32 %v1937, %v1937
            %v2131 = vmul.f32 %v1938, %v1938
            %v2132 = vadd.f32 %v2004, %v2068
            %v2133 = vadd.f32 %v2005, %v2069
            %v2134 = vadd.f32 %v2006, %v2070
            %v2135 = vadd.f32 %v2007, %v2071
            %v2136 = vadd.f32 %v2008, %v2072
            %v2137 = vadd.f32 %v2009, %v2073
            %v2138 = vadd.f32 %v2010, %v2074
            %v2139 = vadd.f32 %v2011, %v2075
            %v2140 = vadd.f32 %v2012, %v2076
            %v2141 = vadd.f32 %v2013, %v2077
            %v2142 = vadd.f32 %v2014, %v2078
            %v2143 = vadd.f32 %v2015, %v2079
            %v2144 = vadd.f32 %v2016, %v2080
            %v2145 = vadd.f32 %v2017, %v2081
            %v2146 = vadd.f32 %v2018, %v2082
            %v2147 = vadd.f32 %v2019, %v2083
            %v2148 = vadd.f32 %v2020, %v2084
            %v2149 = vadd.f32 %v2021, %v2085
            %v2150 = vadd.f32 %v2022, %v2086
            %v2151 = vadd.f32 %v2023, %v2087
            %v2152 = vadd.f32 %v2024, %v2088
            %v2153 = vadd.f32 %v2025, %v2089
            %v2154 = vadd.f32 %v2026, %v2090
            %v2155 = vadd.f32 %v2027, %v2091
            %v2156 = vadd.f32 %v2028, %v2092
            %v2157 = vadd.f32 %v2029, %v2093
            %v2158 = vadd.f32 %v2030, %v2094
            %v2159 = vadd.f32 %v2031, %v2095
            %v2160 = vadd.f32 %v2032, %v2096
            %v2161 = vadd.f32 %v2033, %v2097
            %v2162 = vadd.f32 %v2034, %v2098
            %v2163 = vadd.f32 %v2035, %v2099
            %v2164 = vadd.f32 %v2036, %v2100
            %v2165 = vadd.f32 %v2037, %v2101
            %v2166 = vadd.f32 %v2038, %v2102
            %v2167 = vadd.f32 %v2039, %v2103
            %v2168 = vadd.f32 %v2040, %v2104
            %v2169 = vadd.f32 %v2041, %v2105
            %v2170 = vadd.f32 %v2042, %v2106
            %v2171 = vadd.f32 %v2043, %v2107
            %v2172 = vadd.f32 %v2044, %v2108
            %v2173 = vadd.f32 %v2045, %v2109
            %v2174 = vadd.f32 %v2046, %v2110
            %v2175 = vadd.f32 %v2047, %v2111
            %v2176 = vadd.f32 %v2048, %v2112
            %v2177 = vadd.f32 %v2049, %v2113
            %v2178 = vadd.f32 %v2050, %v2114
            %v2179 = vadd.f32 %v2051, %v2115
            %v2180 = vadd.f32 %v2052, %v2116
            %v2181 = vadd.f32 %v2053, %v2117
            %v2182 = vadd.f32 %v2054, %v2118
            %v2183 = vadd.f32 %v2055, %v2119
            %v2184 = vadd.f32 %v2056, %v2120
            %v2185 = vadd.f32 %v2057, %v2121
            %v2186 = vadd.f32 %v2058, %v2122
            %v2187 = vadd.f32 %v2059, %v2123
            %v2188 = vadd.f32 %v2060, %v2124
            %v2189 = vadd.f32 %v2061, %v2125
            %v2190 = vadd.f32 %v2062, %v2126
            %v2191 = vadd.f32 %v2063, %v2127
            %v2192 = vadd.f32 %v2064, %v2128
            %v2193 = vadd.f32 %v2065, %v2129
            %v2194 = vadd.f32 %v2066, %v2130
            %v2195 = vadd.f32 %v2067, %v2131
            %v2196 = vmul.f32 %v1940, %v1940
            %v2197 = vmul.f32 %v1941, %v1941
            %v2198 = vmul.f32 %v1942, %v1942
            %v2199 = vmul.f32 %v1943, %v1943
            %v2200 = vmul.f32 %v1944, %v1944
            %v2201 = vmul.f32 %v1945, %v1945
            %v2202 = vmul.f32 %v1946, %v1946
            %v2203 = vmul.f32 %v1947, %v1947
            %v2204 = vmul.f32 %v1948, %v1948
            %v2205 = vmul.f32 %v1949, %v1949
            %v2206 = vmul.f32 %v1950, %v1950
            %v2207 = vmul.f32 %v1951, %v1951
            %v2208 = vmul.f32 %v1952, %v1952
            %v2209 = vmul.f32 %v1953, %v1953
            %v2210 = vmul.f32 %v1954, %v1954
            %v2211 = vmul.f32 %v1955, %v1955
            %v2212 = vmul.f32 %v1956, %v1956
            %v2213 = vmul.f32 %v1957, %v1957
            %v2214 = vmul.f32 %v1958, %v1958
            %v2215 = vmul.f32 %v1959, %v1959
            %v2216 = vmul.f32 %v1960, %v1960
            %v2217 = vmul.f32 %v1961, %v1961
            %v2218 = vmul.f32 %v1962, %v1962
            %v2219 = vmul.f32 %v1963, %v1963
            %v2220 = vmul.f32 %v1964, %v1964
            %v2221 = vmul.f32 %v1965, %v1965
            %v2222 = vmul.f32 %v1966, %v1966
            %v2223 = vmul.f32 %v1967, %v1967
            %v2224 = vmul.f32 %v1968, %v1968
            %v2225 = vmul.f32 %v1969, %v1969
            %v2226 = vmul.f32 %v1970, %v1970
            %v2227 = vmul.f32 %v1971, %v1971
            %v2228 = vmul.f32 %v1972, %v1972
            %v2229 = vmul.f32 %v1973, %v1973
            %v2230 = vmul.f32 %v1974, %v1974
            %v2231 = vmul.f32 %v1975, %v1975
            %v2232 = vmul.f32 %v1976, %v1976
            %v2233 = vmul.f32 %v1977, %v1977
            %v2234 = vmul.f32 %v1978, %v1978
            %v2235 = vmul.f32 %v1979, %v1979
            %v2236 = vmul.f32 %v1980, %v1980
            %v2237 = vmul.f32 %v1981, %v1981
            %v2238 = vmul.f32 %v1982, %v1982
            %v2239 = vmul.f32 %v1983, %v1983
            %v2240 = vmul.f32 %v1984, %v1984
            %v2241 = vmul.f32 %v1985, %v1985
            %v2242 = vmul.f32 %v1986, %v1986
            %v2243 = vmul.f32 %v1987, %v1987
            %v2244 = vmul.f32 %v1988, %v1988
            %v2245 = vmul.f32 %v1989, %v1989
            %v2246 = vmul.f32 %v1990, %v1990
            %v2247 = vmul.f32 %v1991, %v1991
            %v2248 = vmul.f32 %v1992, %v1992
            %v2249 = vmul.f32 %v1993, %v1993
            %v2250 = vmul.f32 %v1994, %v1994
            %v2251 = vmul.f32 %v1995, %v1995
            %v2252 = vmul.f32 %v1996, %v1996
            %v2253 = vmul.f32 %v1997, %v1997
            %v2254 = vmul.f32 %v1998, %v1998
            %v2255 = vmul.f32 %v1999, %v1999
            %v2256 = vmul.f32 %v2000, %v2000
            %v2257 = vmul.f32 %v2001, %v2001
            %v2258 = vmul.f32 %v2002, %v2002
            %v2259 = vmul.f32 %v2003, %v2003
            %v2260 = vadd.f32 %v2132, %v2196
            %v2261 = vadd.f32 %v2133, %v2197
            %v2262 = vadd.f32 %v2134, %v2198
            %v2263 = vadd.f32 %v2135, %v2199
            %v2264 = vadd.f32 %v2136, %v2200
            %v2265 = vadd.f32 %v2137, %v2201
            %v2266 = vadd.f32 %v2138, %v2202
            %v2267 = vadd.f32 %v2139, %v2203
            %v2268 = vadd.f32 %v2140, %v2204
            %v2269 = vadd.f32 %v2141, %v2205
            %v2270 = vadd.f32 %v2142, %v2206
            %v2271 = vadd.f32 %v2143, %v2207
            %v2272 = vadd.f32 %v2144, %v2208
            %v2273 = vadd.f32 %v2145, %v2209
            %v2274 = vadd.f32 %v2146, %v2210
            %v2275 = vadd.f32 %v2147, %v2211
            %v2276 = vadd.f32 %v2148, %v2212
            %v2277 = vadd.f32 %v2149, %v2213
            %v2278 = vadd.f32 %v2150, %v2214
            %v2279 = vadd.f32 %v2151, %v2215
            %v2280 = vadd.f32 %v2152, %v2216
            %v2281 = vadd.f32 %v2153, %v2217
            %v2282 = vadd.f32 %v2154, %v2218
            %v2283 = vadd.f32 %v2155, %v2219
            %v2284 = vadd.f32 %v2156, %v2220
            %v2285 = vadd.f32 %v2157, %v2221
            %v2286 = vadd.f32 %v2158, %v2222
            %v2287 = vadd.f32 %v2159, %v2223
            %v2288 = vadd.f32 %v2160, %v2224
            %v2289 = vadd.f32 %v2161, %v2225
            %v2290 = vadd.f32 %v2162, %v2226
            %v2291 = vadd.f32 %v2163, %v2227
            %v2292 = vadd.f32 %v2164, %v2228
            %v2293 = vadd.f32 %v2165, %v2229
            %v2294 = vadd.f32 %v2166, %v2230
            %v2295 = vadd.f32 %v2167, %v2231
            %v2296 = vadd.f32 %v2168, %v2232
            %v2297 = vadd.f32 %v2169, %v2233
            %v2298 = vadd.f32 %v2170, %v2234
            %v2299 = vadd.f32 %v2171, %v2235
            %v2300 = vadd.f32 %v2172, %v2236
            %v2301 = vadd.f32 %v2173, %v2237
            %v2302 = vadd.f32 %v2174, %v2238
            %v2303 = vadd.f32 %v2175, %v2239
            %v2304 = vadd.f32 %v2176, %v2240
            %v2305 = vadd.f32 %v2177, %v2241
            %v2306 = vadd.f32 %v2178, %v2242
            %v2307 = vadd.f32 %v2179, %v2243
            %v2308 = vadd.f32 %v2180, %v2244
            %v2309 = vadd.f32 %v2181, %v2245
            %v2310 = vadd.f32 %v2182, %v2246
            %v2311 = vadd.f32 %v2183, %v2247
            %v2312 = vadd.f32 %v2184, %v2248
            %v2313 = vadd.f32 %v2185, %v2249
            %v2314 = vadd.f32 %v2186, %v2250
            %v2315 = vadd.f32 %v2187, %v2251
            %v2316 = vadd.f32 %v2188, %v2252
            %v2317 = vadd.f32 %v2189, %v2253
            %v2318 = vadd.f32 %v2190, %v2254
            %v2319 = vadd.f32 %v2191, %v2255
            %v2320 = vadd.f32 %v2192, %v2256
            %v2321 = vadd.f32 %v2193, %v2257
            %v2322 = vadd.f32 %v2194, %v2258
            %v2323 = vadd.f32 %v2195, %v2259
            %v2324 = vsub.f32 0.0, %v2260
            %v2325 = vsub.f32 0.0, %v2261
            %v2326 = vsub.f32 0.0, %v2262
            %v2327 = vsub.f32 0.0, %v2263
            %v2328 = vsub.f32 0.0, %v2264
            %v2329 = vsub.f32 0.0, %v2265
            %v2330 = vsub.f32 0.0, %v2266
            %v2331 = vsub.f32 0.0, %v2267
            %v2332 = vsub.f32 0.0, %v2268
            %v2333 = vsub.f32 0.0, %v2269
            %v2334 = vsub.f32 0.0, %v2270
            %v2335 = vsub.f32 0.0, %v2271
            %v2336 = vsub.f32 0.0, %v2272
            %v2337 = vsub.f32 0.0, %v2273
            %v2338 = vsub.f32 0.0, %v2274
            %v2339 = vsub.f32 0.0, %v2275
            %v2340 = vsub.f32 0.0, %v2276
            %v2341 = vsub.f32 0.0, %v2277
            %v2342 = vsub.f32 0.0, %v2278
            %v2343 = vsub.f32 0.0, %v2279
            %v2344 = vsub.f32 0.0, %v2280
            %v2345 = vsub.f32 0.0, %v2281
            %v2346 = vsub.f32 0.0, %v2282
            %v2347 = vsub.f32 0.0, %v2283
            %v2348 = vsub.f32 0.0, %v2284
            %v2349 = vsub.f32 0.0, %v2285
            %v2350 = vsub.f32 0.0, %v2286
            %v2351 = vsub.f32 0.0, %v2287
            %v2352 = vsub.f32 0.0, %v2288
            %v2353 = vsub.f32 0.0, %v2289
            %v2354 = vsub.f32 0.0, %v2290
            %v2355 = vsub.f32 0.0, %v2291
            %v2356 = vsub.f32 0.0, %v2292
            %v2357 = vsub.f32 0.0, %v2293
            %v2358 = vsub.f32 0.0, %v2294
            %v2359 = vsub.f32 0.0, %v2295
            %v2360 = vsub.f32 0.0, %v2296
            %v2361 = vsub.f32 0.0, %v2297
            %v2362 = vsub.f32 0.0, %v2298
            %v2363 = vsub.f32 0.0, %v2299
            %v2364 = vsub.f32 0.0, %v2300
            %v2365 = vsub.f32 0.0, %v2301
            %v2366 = vsub.f32 0.0, %v2302
            %v2367 = vsub.f32 0.0, %v2303
            %v2368 = vsub.f32 0.0, %v2304
            %v2369 = vsub.f32 0.0, %v2305
            %v2370 = vsub.f32 0.0, %v2306
            %v2371 = vsub.f32 0.0, %v2307
            %v2372 = vsub.f32 0.0, %v2308
            %v2373 = vsub.f32 0.0, %v2309
            %v2374 = vsub.f32 0.0, %v2310
            %v2375 = vsub.f32 0.0, %v2311
            %v2376 = vsub.f32 0.0, %v2312
            %v2377 = vsub.f32 0.0, %v2313
            %v2378 = vsub.f32 0.0, %v2314
            %v2379 = vsub.f32 0.0, %v2315
            %v2380 = vsub.f32 0.0, %v2316
            %v2381 = vsub.f32 0.0, %v2317
            %v2382 = vsub.f32 0.0, %v2318
            %v2383 = vsub.f32 0.0, %v2319
            %v2384 = vsub.f32 0.0, %v2320
            %v2385 = vsub.f32 0.0, %v2321
            %v2386 = vsub.f32 0.0, %v2322
            %v2387 = vsub.f32 0.0, %v2323
            %v2388 = vmul.f32 %v2324, 1.442695
            %v2389 = vpow.pop %v2388
            %v2390 = vmul.f32 %v2325, 1.442695
            %v2391 = vpow.pop %v2390
            %v2392 = vmul.f32 %v2326, 1.442695
            %v2393 = vpow.pop %v2392
            %v2394 = vmul.f32 %v2327, 1.442695
            %v2395 = vpow.pop %v2394
            %v2396 = vmul.f32 %v2328, 1.442695
            %v2397 = vpow.pop %v2396
            %v2398 = vmul.f32 %v2329, 1.442695
            %v2399 = vpow.pop %v2398
            %v2400 = vmul.f32 %v2330, 1.442695
            %v2401 = vpow.pop %v2400
            %v2402 = vmul.f32 %v2331, 1.442695
            %v2403 = vpow.pop %v2402
            %v2404 = vmul.f32 %v2332, 1.442695
            %v2405 = vpow.pop %v2404
            %v2406 = vmul.f32 %v2333, 1.442695
            %v2407 = vpow.pop %v2406
            %v2408 = vmul.f32 %v2334, 1.442695
            %v2409 = vpow.pop %v2408
            %v2410 = vmul.f32 %v2335, 1.442695
            %v2411 = vpow.pop %v2410
            %v2412 = vmul.f32 %v2336, 1.442695
            %v2413 = vpow.pop %v2412
            %v2414 = vmul.f32 %v2337, 1.442695
            %v2415 = vpow.pop %v2414
            %v2416 = vmul.f32 %v2338, 1.442695
            %v2417 = vpow.pop %v2416
            %v2418 = vmul.f32 %v2339, 1.442695
            %v2419 = vpow.pop %v2418
            %v2420 = vmul.f32 %v2340, 1.442695
            %v2421 = vpow.pop %v2420
            %v2422 = vmul.f32 %v2341, 1.442695
            %v2423 = vpow.pop %v2422
            %v2424 = vmul.f32 %v2342, 1.442695
            %v2425 = vpow.pop %v2424
            %v2426 = vmul.f32 %v2343, 1.442695
            %v2427 = vpow.pop %v2426
            %v2428 = vmul.f32 %v2344, 1.442695
            %v2429 = vpow.pop %v2428
            %v2430 = vmul.f32 %v2345, 1.442695
            %v2431 = vpow.pop %v2430
            %v2432 = vmul.f32 %v2346, 1.442695
            %v2433 = vpow.pop %v2432
            %v2434 = vmul.f32 %v2347, 1.442695
            %v2435 = vpow.pop %v2434
            %v2436 = vmul.f32 %v2348, 1.442695
            %v2437 = vpow.pop %v2436
            %v2438 = vmul.f32 %v2349, 1.442695
            %v2439 = vpow.pop %v2438
            %v2440 = vmul.f32 %v2350, 1.442695
            %v2441 = vpow.pop %v2440
            %v2442 = vmul.f32 %v2351, 1.442695
            %v2443 = vpow.pop %v2442
            %v2444 = vmul.f32 %v2352, 1.442695
            %v2445 = vpow.pop %v2444
            %v2446 = vmul.f32 %v2353, 1.442695
            %v2447 = vpow.pop %v2446
            %v2448 = vmul.f32 %v2354, 1.442695
            %v2449 = vpow.pop %v2448
            %v2450 = vmul.f32 %v2355, 1.442695
            %v2451 = vpow.pop %v2450
            %v2452 = vmul.f32 %v2356, 1.442695
            %v2453 = vpow.pop %v2452
            %v2454 = vmul.f32 %v2357, 1.442695
            %v2455 = vpow.pop %v2454
            %v2456 = vmul.f32 %v2358, 1.442695
            %v2457 = vpow.pop %v2456
            %v2458 = vmul.f32 %v2359, 1.442695
            %v2459 = vpow.pop %v2458
            %v2460 = vmul.f32 %v2360, 1.442695
            %v2461 = vpow.pop %v2460
            %v2462 = vmul.f32 %v2361, 1.442695
            %v2463 = vpow.pop %v2462
            %v2464 = vmul.f32 %v2362, 1.442695
            %v2465 = vpow.pop %v2464
            %v2466 = vmul.f32 %v2363, 1.442695
            %v2467 = vpow.pop %v2466
            %v2468 = vmul.f32 %v2364, 1.442695
            %v2469 = vpow.pop %v2468
            %v2470 = vmul.f32 %v2365, 1.442695
            %v2471 = vpow.pop %v2470
            %v2472 = vmul.f32 %v2366, 1.442695
            %v2473 = vpow.pop %v2472
            %v2474 = vmul.f32 %v2367, 1.442695
            %v2475 = vpow.pop %v2474
            %v2476 = vmul.f32 %v2368, 1.442695
            %v2477 = vpow.pop %v2476
            %v2478 = vmul.f32 %v2369, 1.442695
            %v2479 = vpow.pop %v2478
            %v2480 = vmul.f32 %v2370, 1.442695
            %v2481 = vpow.pop %v2480
            %v2482 = vmul.f32 %v2371, 1.442695
            %v2483 = vpow.pop %v2482
            %v2484 = vmul.f32 %v2372, 1.442695
            %v2485 = vpow.pop %v2484
            %v2486 = vmul.f32 %v2373, 1.442695
            %v2487 = vpow.pop %v2486
            %v2488 = vmul.f32 %v2374, 1.442695
            %v2489 = vpow.pop %v2488
            %v2490 = vmul.f32 %v2375, 1.442695
            %v2491 = vpow.pop %v2490
            %v2492 = vmul.f32 %v2376, 1.442695
            %v2493 = vpow.pop %v2492
            %v2494 = vmul.f32 %v2377, 1.442695
            %v2495 = vpow.pop %v2494
            %v2496 = vmul.f32 %v2378, 1.442695
            %v2497 = vpow.pop %v2496
            %v2498 = vmul.f32 %v2379, 1.442695
            %v2499 = vpow.pop %v2498
            %v2500 = vmul.f32 %v2380, 1.442695
            %v2501 = vpow.pop %v2500
            %v2502 = vmul.f32 %v2381, 1.442695
            %v2503 = vpow.pop %v2502
            %v2504 = vmul.f32 %v2382, 1.442695
            %v2505 = vpow.pop %v2504
            %v2506 = vmul.f32 %v2383, 1.442695
            %v2507 = vpow.pop %v2506
            %v2508 = vmul.f32 %v2384, 1.442695
            %v2509 = vpow.pop %v2508
            %v2510 = vmul.f32 %v2385, 1.442695
            %v2511 = vpow.pop %v2510
            %v2512 = vmul.f32 %v2386, 1.442695
            %v2513 = vpow.pop %v2512
            %v2514 = vmul.f32 %v2387, 1.442695
            %v2515 = vpow.pop %v2514
            %2516 = vxpose.xlu0.b32.start [1/16] %v706, 128
            %2517 = vxpose.xlu0.b32.cont [2/16] %v707, 128
            %2518 = vxpose.xlu0.b32.cont [3/16] %v708, 128
            %2519 = vxpose.xlu0.b32.cont [4/16] %v709, 128
            %2520 = vxpose.xlu0.b32.cont [5/16] %v710, 128
            %2521 = vxpose.xlu0.b32.cont [6/16] %v711, 128
            %2522 = vxpose.xlu0.b32.cont [7/16] %v712, 128
            %2523 = vxpose.xlu0.b32.cont [8/16] %v713, 128
            %2524 = vxpose.xlu0.b32.cont [9/16] %v714, 128
            %2525 = vxpose.xlu0.b32.cont [10/16] %v715, 128
            %2526 = vxpose.xlu0.b32.cont [11/16] %v716, 128
            %2527 = vxpose.xlu0.b32.cont [12/16] %v717, 128
            %2528 = vxpose.xlu0.b32.cont [13/16] %v718, 128
            %2529 = vxpose.xlu0.b32.cont [14/16] %v719, 128
            %2530 = vxpose.xlu0.b32.cont [15/16] %v720, 128
            %2531 = vxpose.xlu0.b32.end [16/16] %v721, 128
            %v2532 = vpop.trf.xlu0
            %v2533 = vpop.trf.xlu0
            %v2534 = vpop.trf.xlu0
            %v2535 = vpop.trf.xlu0
            %v2536 = vpop.trf.xlu0
            %v2537 = vpop.trf.xlu0
            %v2538 = vpop.trf.xlu0
            %v2539 = vpop.trf.xlu0
            %v2540 = vpop.trf.xlu0
            %v2541 = vpop.trf.xlu0
            %v2542 = vpop.trf.xlu0
            %v2543 = vpop.trf.xlu0
            %v2544 = vpop.trf.xlu0
            %v2545 = vpop.trf.xlu0
            %v2546 = vpop.trf.xlu0
            %v2547 = vpop.trf.xlu0
            %2548 = vxpose.xlu0.b32.start [1/16] %v722, 128
            %2549 = vxpose.xlu0.b32.cont [2/16] %v723, 128
            %2550 = vxpose.xlu0.b32.cont [3/16] %v724, 128
            %2551 = vxpose.xlu0.b32.cont [4/16] %v725, 128
            %2552 = vxpose.xlu0.b32.cont [5/16] %v726, 128
            %2553 = vxpose.xlu0.b32.cont [6/16] %v727, 128
            %2554 = vxpose.xlu0.b32.cont [7/16] %v728, 128
            %2555 = vxpose.xlu0.b32.cont [8/16] %v729, 128
            %2556 = vxpose.xlu0.b32.cont [9/16] %v730, 128
            %2557 = vxpose.xlu0.b32.cont [10/16] %v731, 128
            %2558 = vxpose.xlu0.b32.cont [11/16] %v732, 128
            %2559 = vxpose.xlu0.b32.cont [12/16] %v733, 128
            %2560 = vxpose.xlu0.b32.cont [13/16] %v734, 128
            %2561 = vxpose.xlu0.b32.cont [14/16] %v735, 128
            %2562 = vxpose.xlu0.b32.cont [15/16] %v736, 128
            %2563 = vxpose.xlu0.b32.end [16/16] %v737, 128
            %v2564 = vpop.trf.xlu0
            %v2565 = vpop.trf.xlu0
            %v2566 = vpop.trf.xlu0
            %v2567 = vpop.trf.xlu0
            %v2568 = vpop.trf.xlu0
            %v2569 = vpop.trf.xlu0
            %v2570 = vpop.trf.xlu0
            %v2571 = vpop.trf.xlu0
            %v2572 = vpop.trf.xlu0
            %v2573 = vpop.trf.xlu0
            %v2574 = vpop.trf.xlu0
            %v2575 = vpop.trf.xlu0
            %v2576 = vpop.trf.xlu0
            %v2577 = vpop.trf.xlu0
            %v2578 = vpop.trf.xlu0
            %v2579 = vpop.trf.xlu0
            %2580 = vxpose.xlu0.b32.start [1/16] %v738, 128
            %2581 = vxpose.xlu0.b32.cont [2/16] %v739, 128
            %2582 = vxpose.xlu0.b32.cont [3/16] %v740, 128
            %2583 = vxpose.xlu0.b32.cont [4/16] %v741, 128
            %2584 = vxpose.xlu0.b32.cont [5/16] %v742, 128
            %2585 = vxpose.xlu0.b32.cont [6/16] %v743, 128
            %2586 = vxpose.xlu0.b32.cont [7/16] %v744, 128
            %2587 = vxpose.xlu0.b32.cont [8/16] %v745, 128
            %2588 = vxpose.xlu0.b32.cont [9/16] %v746, 128
            %2589 = vxpose.xlu0.b32.cont [10/16] %v747, 128
            %2590 = vxpose.xlu0.b32.cont [11/16] %v748, 128
            %2591 = vxpose.xlu0.b32.cont [12/16] %v749, 128
            %2592 = vxpose.xlu0.b32.cont [13/16] %v750, 128
            %2593 = vxpose.xlu0.b32.cont [14/16] %v751, 128
            %2594 = vxpose.xlu0.b32.cont [15/16] %v752, 128
            %2595 = vxpose.xlu0.b32.end [16/16] %v753, 128
            %v2596 = vpop.trf.xlu0
            %v2597 = vpop.trf.xlu0
            %v2598 = vpop.trf.xlu0
            %v2599 = vpop.trf.xlu0
            %v2600 = vpop.trf.xlu0
            %v2601 = vpop.trf.xlu0
            %v2602 = vpop.trf.xlu0
            %v2603 = vpop.trf.xlu0
            %v2604 = vpop.trf.xlu0
            %v2605 = vpop.trf.xlu0
            %v2606 = vpop.trf.xlu0
            %v2607 = vpop.trf.xlu0
            %v2608 = vpop.trf.xlu0
            %v2609 = vpop.trf.xlu0
            %v2610 = vpop.trf.xlu0
            %v2611 = vpop.trf.xlu0
            %2612 = vxpose.xlu0.b32.start [1/16] %v754, 128
            %2613 = vxpose.xlu0.b32.cont [2/16] %v755, 128
            %2614 = vxpose.xlu0.b32.cont [3/16] %v756, 128
            %2615 = vxpose.xlu0.b32.cont [4/16] %v757, 128
            %2616 = vxpose.xlu0.b32.cont [5/16] %v758, 128
            %2617 = vxpose.xlu0.b32.cont [6/16] %v759, 128
            %2618 = vxpose.xlu0.b32.cont [7/16] %v760, 128
            %2619 = vxpose.xlu0.b32.cont [8/16] %v761, 128
            %2620 = vxpose.xlu0.b32.cont [9/16] %v762, 128
            %2621 = vxpose.xlu0.b32.cont [10/16] %v763, 128
            %2622 = vxpose.xlu0.b32.cont [11/16] %v764, 128
            %2623 = vxpose.xlu0.b32.cont [12/16] %v765, 128
            %2624 = vxpose.xlu0.b32.cont [13/16] %v766, 128
            %2625 = vxpose.xlu0.b32.cont [14/16] %v767, 128
            %2626 = vxpose.xlu0.b32.cont [15/16] %v768, 128
            %2627 = vxpose.xlu0.b32.end [16/16] %v769, 128
            %v2628 = vpop.trf.xlu0
            %v2629 = vpop.trf.xlu0
            %v2630 = vpop.trf.xlu0
            %v2631 = vpop.trf.xlu0
            %v2632 = vpop.trf.xlu0
            %v2633 = vpop.trf.xlu0
            %v2634 = vpop.trf.xlu0
            %v2635 = vpop.trf.xlu0
            %v2636 = vpop.trf.xlu0
            %v2637 = vpop.trf.xlu0
            %v2638 = vpop.trf.xlu0
            %v2639 = vpop.trf.xlu0
            %v2640 = vpop.trf.xlu0
            %v2641 = vpop.trf.xlu0
            %v2642 = vpop.trf.xlu0
            %v2643 = vpop.trf.xlu0
            %2644 = vmatpush.msra.mxu0 %v2419
            %2645 = vmatpush.msra.mxu0 %v2417
            %2646 = vmatpush.msra.mxu0 %v2415
            %2647 = vmatpush.msra.mxu0 %v2413
            %2648 = vmatpush.msra.mxu0 %v2411
            %2649 = vmatpush.msra.mxu0 %v2409
            %2650 = vmatpush.msra.mxu0 %v2407
            %2651 = vmatpush.msra.mxu0 %v2405
            %2652 = vmatpush.msra.mxu0 %v2403
            %2653 = vmatpush.msra.mxu0 %v2401
            %2654 = vmatpush.msra.mxu0 %v2399
            %2655 = vmatpush.msra.mxu0 %v2397
            %2656 = vmatpush.msra.mxu0 %v2395
            %2657 = vmatpush.msra.mxu0 %v2393
            %2658 = vmatpush.msra.mxu0 %v2391
            %2659 = vmatpush.msra.mxu0 %v2389
            %2660 = vmatmul.f32.gmra.mxu0 %v2532
            %v2661 = vpop.f32.mrf.mxu0
            %v2662 = vadd.f32 0.0, %v2661
            %2663 = vdwg.mxu0
            %2664 = vmatpush.msra.mxu0 %v2451
            %2665 = vmatpush.msra.mxu0 %v2449
            %2666 = vmatpush.msra.mxu0 %v2447
            %2667 = vmatpush.msra.mxu0 %v2445
            %2668 = vmatpush.msra.mxu0 %v2443
            %2669 = vmatpush.msra.mxu0 %v2441
            %2670 = vmatpush.msra.mxu0 %v2439
            %2671 = vmatpush.msra.mxu0 %v2437
            %2672 = vmatpush.msra.mxu0 %v2435
            %2673 = vmatpush.msra.mxu0 %v2433
            %2674 = vmatpush.msra.mxu0 %v2431
            %2675 = vmatpush.msra.mxu0 %v2429
            %2676 = vmatpush.msra.mxu0 %v2427
            %2677 = vmatpush.msra.mxu0 %v2425
            %2678 = vmatpush.msra.mxu0 %v2423
            %2679 = vmatpush.msra.mxu0 %v2421
            %2680 = vmatmul.f32.gmra.mxu0 %v2564
            %v2681 = vpop.f32.mrf.mxu0
            %v2682 = vadd.f32 %v2662, %v2681
            %2683 = vdwg.mxu0
            %2684 = vmatpush.msra.mxu0 %v2483
            %2685 = vmatpush.msra.mxu0 %v2481
            %2686 = vmatpush.msra.mxu0 %v2479
            %2687 = vmatpush.msra.mxu0 %v2477
            %2688 = vmatpush.msra.mxu0 %v2475
            %2689 = vmatpush.msra.mxu0 %v2473
            %2690 = vmatpush.msra.mxu0 %v2471
            %2691 = vmatpush.msra.mxu0 %v2469
            %2692 = vmatpush.msra.mxu0 %v2467
            %2693 = vmatpush.msra.mxu0 %v2465
            %2694 = vmatpush.msra.mxu0 %v2463
            %2695 = vmatpush.msra.mxu0 %v2461
            %2696 = vmatpush.msra.mxu0 %v2459
            %2697 = vmatpush.msra.mxu0 %v2457
            %2698 = vmatpush.msra.mxu0 %v2455
            %2699 = vmatpush.msra.mxu0 %v2453
            %2700 = vmatmul.f32.gmra.mxu0 %v2596
            %v2701 = vpop.f32.mrf.mxu0
            %v2702 = vadd.f32 %v2682, %v2701
            %2703 = vdwg.mxu0
            %2704 = vmatpush.msra.mxu0 %v2515
            %2705 = vmatpush.msra.mxu0 %v2513
            %2706 = vmatpush.msra.mxu0 %v2511
            %2707 = vmatpush.msra.mxu0 %v2509
            %2708 = vmatpush.msra.mxu0 %v2507
            %2709 = vmatpush.msra.mxu0 %v2505
            %2710 = vmatpush.msra.mxu0 %v2503
            %2711 = vmatpush.msra.mxu0 %v2501
            %2712 = vmatpush.msra.mxu0 %v2499
            %2713 = vmatpush.msra.mxu0 %v2497
            %2714 = vmatpush.msra.mxu0 %v2495
            %2715 = vmatpush.msra.mxu0 %v2493
            %2716 = vmatpush.msra.mxu0 %v2491
            %2717 = vmatpush.msra.mxu0 %v2489
            %2718 = vmatpush.msra.mxu0 %v2487
            %2719 = vmatpush.msra.mxu0 %v2485
            %2720 = vmatmul.f32.gmra.mxu0 %v2628
            %v2721 = vpop.f32.mrf.mxu0
            %v2722 = vadd.f32 %v2702, %v2721
            %2723 = vdwg.mxu0
            %s2724 = smul.u32 %s1801, 128
            %s2725 = sshra.s32 %s2724, 7
            %s2726 = sand.u32 %s2724, 127
            %s2727 = smul.addr %s2725, 2
            %s2728 = scalar_lea.vmem [#allocation2], %s2727
            %v2729 = vld [vmem:[%s2728] sm:$0x3]
            %v2730 = vadd.f32 %v2729, %v2722
            %2731 = vst [vmem:[%s2728] sm:$0x3] %v2730
          $region53: #{field_conv.1} parent=47 // loop_footer
            %s1805 = sadd.s32 1, %s1801
          $region54: #{field_conv.1} parent=47 // loop_footer_branch
            %1800 = sbr.rel target = $region50
          $region55: #{field_conv.1} parent=47 // loop_exit
            _
        $region48: #{field_conv.1} parent=39 // pred_fallthru
          _
        %p2732 = scmp.eq.s32.totalorder %s35, 1
        // Predicated region
        $region56: #{field_conv.1} parent=39 // pred_check
          %p2733 = pneg %p2732
        $region57: #{field_conv.1} parent=39 // pred_check_branch
          %2735 = sbr.rel (%p2733) target = $region59
        $region58: #{field_conv.1} parent=39 // pred_region
          %v2736 = vld [vmem:[#allocation2] ss:$2 sm:$0xff]
          %s2737 = scalar_lea.vmem [#allocation2], 16
          %v2738 = vld [vmem:[%s2737] ss:$2 sm:$0xff]
          %s2739 = scalar_lea.vmem [#allocation2], 32
          %v2740 = vld [vmem:[%s2739] ss:$2 sm:$0xff]
          %s2741 = scalar_lea.vmem [#allocation2], 48
          %v2742 = vld [vmem:[%s2741] ss:$2 sm:$0xff]
          %s2743 = scalar_lea.vmem [#allocation2], 1
          %v2744 = vld [vmem:[%s2743] ss:$2 sm:$0xff]
          %s2745 = scalar_lea.vmem [#allocation2], 17
          %v2746 = vld [vmem:[%s2745] ss:$2 sm:$0xff]
          %s2747 = scalar_lea.vmem [#allocation2], 33
          %v2748 = vld [vmem:[%s2747] ss:$2 sm:$0xff]
          %s2749 = scalar_lea.vmem [#allocation2], 49
          %v2750 = vld [vmem:[%s2749] ss:$2 sm:$0xff]
          %v2751 = vadd.f32 %v2744, 1e-12
          %v2752 = vadd.f32 %v2746, 1e-12
          %v2753 = vadd.f32 %v2748, 1e-12
          %v2754 = vadd.f32 %v2750, 1e-12
          %v2755 = vrcp.pop %v2751
          %v2756 = vrcp.pop %v2752
          %v2757 = vrcp.pop %v2753
          %v2758 = vrcp.pop %v2754
          %v2759 = vmul.f32 %v2736, %v2755
          %v2760 = vmul.f32 %v2738, %v2756
          %v2761 = vmul.f32 %v2740, %v2757
          %v2762 = vmul.f32 %v2742, %v2758
          %v2763 = vld [vmem:[%s4] sm:$0xff]
          %v2764 = vld [vmem:[%s4 + $0x8] sm:$0xff]
          %v2765 = vld [vmem:[%s4 + $0x10] sm:$0xff]
          %v2766 = vld [vmem:[%s4 + $0x18] sm:$0xff]
          %v2767 = vld [vmem:[%s5] sm:$0xff]
          %v2768 = vld [vmem:[%s5 + $0x8] sm:$0xff]
          %v2769 = vld [vmem:[%s5 + $0x10] sm:$0xff]
          %v2770 = vld [vmem:[%s5 + $0x18] sm:$0xff]
          %2772 = vset.pattern.permute.xlu0 0
          %2773 = vperm.xlu0 %2772, %v2767
          %v2774 = vpop.permute.xlu0 %2773
          %2777 = vset.pattern.permute.xlu0 0
          %2778 = vperm.xlu0 %2777, %v2768
          %v2779 = vpop.permute.xlu0 %2778
          %2782 = vset.pattern.permute.xlu0 0
          %2783 = vperm.xlu0 %2782, %v2769
          %v2784 = vpop.permute.xlu0 %2783
          %2787 = vset.pattern.permute.xlu0 0
          %2788 = vperm.xlu0 %2787, %v2770
          %v2789 = vpop.permute.xlu0 %2788
          %vm2791 = vcmask 261120
          %v2793 = vsel %vm2791, %v2763, 0
          %v2796 = vsel %vm2791, %v2764, 0
          %v2799 = vsel %vm2791, %v2765, 0
          %v2802 = vsel %vm2791, %v2766, 0
          %2804 = vmatpush.msra.mxu0 0.0
          %2805 = vmatpush.msra.mxu0 0.0
          %2806 = vmatpush.msra.mxu0 0.0
          %2807 = vmatpush.msra.mxu0 0.0
          %2808 = vmatpush.msra.mxu0 0.0
          %2809 = vmatpush.msra.mxu0 0.0
          %2810 = vmatpush.msra.mxu0 0.0
          %2811 = vmatpush.msra.mxu0 0.0
          %2812 = vmatpush.msra.mxu0 0.0
          %2813 = vmatpush.msra.mxu0 0.0
          %2814 = vmatpush.msra.mxu0 0.0
          %2815 = vmatpush.msra.mxu0 0.0
          %v2816 = vand.u32 %v2762, 4294901760
          %2817 = vmatpush.msra.mxu0 %v2816
          %v2818 = vand.u32 %v2761, 4294901760
          %2819 = vmatpush.msra.mxu0 %v2818
          %v2820 = vand.u32 %v2760, 4294901760
          %2821 = vmatpush.msra.mxu0 %v2820
          %v2822 = vand.u32 %v2759, 4294901760
          %2823 = vmatpush.msra.mxu0 %v2822
          %v2824 = vand.u32 %v2793, 4294901760
          %v2825 = vsub.f32 %v2793, %v2824
          %v2826 = vand.u32 %v2825, 4294901760
          %v2827 = vsub.f32 %v2825, %v2826
          %v2828 = vand.u32 %v2827, 4294901760
          %2829 = vmatmul.f32.gmra.mxu0 %v2828
          %v2830 = vpop.f32.mrf.mxu0
          %v2831 = vadd.f32 %v2774, %v2830
          %v2832 = vand.u32 %v2796, 4294901760
          %v2833 = vsub.f32 %v2796, %v2832
          %v2834 = vand.u32 %v2833, 4294901760
          %v2835 = vsub.f32 %v2833, %v2834
          %v2836 = vand.u32 %v2835, 4294901760
          %2837 = vmatmul.f32.gmra.mxu0 %v2836
          %v2838 = vpop.f32.mrf.mxu0
          %v2839 = vadd.f32 %v2779, %v2838
          %v2840 = vand.u32 %v2799, 4294901760
          %v2841 = vsub.f32 %v2799, %v2840
          %v2842 = vand.u32 %v2841, 4294901760
          %v2843 = vsub.f32 %v2841, %v2842
          %v2844 = vand.u32 %v2843, 4294901760
          %2845 = vmatmul.f32.gmra.mxu0 %v2844
          %v2846 = vpop.f32.mrf.mxu0
          %v2847 = vadd.f32 %v2784, %v2846
          %v2848 = vand.u32 %v2802, 4294901760
          %v2849 = vsub.f32 %v2802, %v2848
          %v2850 = vand.u32 %v2849, 4294901760
          %v2851 = vsub.f32 %v2849, %v2850
          %v2852 = vand.u32 %v2851, 4294901760
          %2853 = vmatmul.f32.gmra.mxu0 %v2852
          %v2854 = vpop.f32.mrf.mxu0
          %v2855 = vadd.f32 %v2789, %v2854
          %2856 = vdwg.mxu0
          %2857 = vmatpush.msra.mxu0 0.0
          %2858 = vmatpush.msra.mxu0 0.0
          %2859 = vmatpush.msra.mxu0 0.0
          %2860 = vmatpush.msra.mxu0 0.0
          %2861 = vmatpush.msra.mxu0 0.0
          %2862 = vmatpush.msra.mxu0 0.0
          %2863 = vmatpush.msra.mxu0 0.0
          %2864 = vmatpush.msra.mxu0 0.0
          %2865 = vmatpush.msra.mxu0 0.0
          %2866 = vmatpush.msra.mxu0 0.0
          %2867 = vmatpush.msra.mxu0 0.0
          %2868 = vmatpush.msra.mxu0 0.0
          %v2869 = vand.u32 %v2762, 4294901760
          %v2870 = vsub.f32 %v2762, %v2869
          %v2871 = vand.u32 %v2870, 4294901760
          %v2872 = vsub.f32 %v2870, %v2871
          %v2873 = vand.u32 %v2872, 4294901760
          %2874 = vmatpush.msra.mxu0 %v2873
          %v2875 = vand.u32 %v2761, 4294901760
          %v2876 = vsub.f32 %v2761, %v2875
          %v2877 = vand.u32 %v2876, 4294901760
          %v2878 = vsub.f32 %v2876, %v2877
          %v2879 = vand.u32 %v2878, 4294901760
          %2880 = vmatpush.msra.mxu0 %v2879
          %v2881 = vand.u32 %v2760, 4294901760
          %v2882 = vsub.f32 %v2760, %v2881
          %v2883 = vand.u32 %v2882, 4294901760
          %v2884 = vsub.f32 %v2882, %v2883
          %v2885 = vand.u32 %v2884, 4294901760
          %2886 = vmatpush.msra.mxu0 %v2885
          %v2887 = vand.u32 %v2759, 4294901760
          %v2888 = vsub.f32 %v2759, %v2887
          %v2889 = vand.u32 %v2888, 4294901760
          %v2890 = vsub.f32 %v2888, %v2889
          %v2891 = vand.u32 %v2890, 4294901760
          %2892 = vmatpush.msra.mxu0 %v2891
          %v2893 = vand.u32 %v2793, 4294901760
          %2894 = vmatmul.f32.gmra.mxu0 %v2893
          %v2895 = vpop.f32.mrf.mxu0
          %v2896 = vadd.f32 %v2831, %v2895
          %v2897 = vand.u32 %v2796, 4294901760
          %2898 = vmatmul.f32.gmra.mxu0 %v2897
          %v2899 = vpop.f32.mrf.mxu0
          %v2900 = vadd.f32 %v2839, %v2899
          %v2901 = vand.u32 %v2799, 4294901760
          %2902 = vmatmul.f32.gmra.mxu0 %v2901
          %v2903 = vpop.f32.mrf.mxu0
          %v2904 = vadd.f32 %v2847, %v2903
          %v2905 = vand.u32 %v2802, 4294901760
          %2906 = vmatmul.f32.gmra.mxu0 %v2905
          %v2907 = vpop.f32.mrf.mxu0
          %v2908 = vadd.f32 %v2855, %v2907
          %2909 = vdwg.mxu0
          %2910 = vmatpush.msra.mxu0 0.0
          %2911 = vmatpush.msra.mxu0 0.0
          %2912 = vmatpush.msra.mxu0 0.0
          %2913 = vmatpush.msra.mxu0 0.0
          %2914 = vmatpush.msra.mxu0 0.0
          %2915 = vmatpush.msra.mxu0 0.0
          %2916 = vmatpush.msra.mxu0 0.0
          %2917 = vmatpush.msra.mxu0 0.0
          %2918 = vmatpush.msra.mxu0 0.0
          %2919 = vmatpush.msra.mxu0 0.0
          %2920 = vmatpush.msra.mxu0 0.0
          %2921 = vmatpush.msra.mxu0 0.0
          %v2922 = vand.u32 %v2762, 4294901760
          %v2923 = vsub.f32 %v2762, %v2922
          %2924 = vmatpush.msra.mxu0 %v2923
          %v2925 = vand.u32 %v2761, 4294901760
          %v2926 = vsub.f32 %v2761, %v2925
          %2927 = vmatpush.msra.mxu0 %v2926
          %v2928 = vand.u32 %v2760, 4294901760
          %v2929 = vsub.f32 %v2760, %v2928
          %2930 = vmatpush.msra.mxu0 %v2929
          %v2931 = vand.u32 %v2759, 4294901760
          %v2932 = vsub.f32 %v2759, %v2931
          %2933 = vmatpush.msra.mxu0 %v2932
          %v2934 = vand.u32 %v2793, 4294901760
          %v2935 = vsub.f32 %v2793, %v2934
          %2936 = vmatmul.f32.gmra.mxu0 %v2935
          %v2937 = vpop.f32.mrf.mxu0
          %v2938 = vadd.f32 %v2896, %v2937
          %v2939 = vand.u32 %v2796, 4294901760
          %v2940 = vsub.f32 %v2796, %v2939
          %2941 = vmatmul.f32.gmra.mxu0 %v2940
          %v2942 = vpop.f32.mrf.mxu0
          %v2943 = vadd.f32 %v2900, %v2942
          %v2944 = vand.u32 %v2799, 4294901760
          %v2945 = vsub.f32 %v2799, %v2944
          %2946 = vmatmul.f32.gmra.mxu0 %v2945
          %v2947 = vpop.f32.mrf.mxu0
          %v2948 = vadd.f32 %v2904, %v2947
          %v2949 = vand.u32 %v2802, 4294901760
          %v2950 = vsub.f32 %v2802, %v2949
          %2951 = vmatmul.f32.gmra.mxu0 %v2950
          %v2952 = vpop.f32.mrf.mxu0
          %v2953 = vadd.f32 %v2908, %v2952
          %2954 = vdwg.mxu0
          %2955 = vmatpush.msra.mxu0 0.0
          %2956 = vmatpush.msra.mxu0 0.0
          %2957 = vmatpush.msra.mxu0 0.0
          %2958 = vmatpush.msra.mxu0 0.0
          %2959 = vmatpush.msra.mxu0 0.0
          %2960 = vmatpush.msra.mxu0 0.0
          %2961 = vmatpush.msra.mxu0 0.0
          %2962 = vmatpush.msra.mxu0 0.0
          %2963 = vmatpush.msra.mxu0 0.0
          %2964 = vmatpush.msra.mxu0 0.0
          %2965 = vmatpush.msra.mxu0 0.0
          %2966 = vmatpush.msra.mxu0 0.0
          %v2967 = vand.u32 %v2762, 4294901760
          %2968 = vmatpush.msra.mxu0 %v2967
          %v2969 = vand.u32 %v2761, 4294901760
          %2970 = vmatpush.msra.mxu0 %v2969
          %v2971 = vand.u32 %v2760, 4294901760
          %2972 = vmatpush.msra.mxu0 %v2971
          %v2973 = vand.u32 %v2759, 4294901760
          %2974 = vmatpush.msra.mxu0 %v2973
          %v2975 = vand.u32 %v2793, 4294901760
          %v2976 = vsub.f32 %v2793, %v2975
          %v2977 = vand.u32 %v2976, 4294901760
          %2978 = vmatmul.f32.gmra.mxu0 %v2977
          %v2979 = vpop.f32.mrf.mxu0
          %v2980 = vadd.f32 %v2938, %v2979
          %v2981 = vand.u32 %v2796, 4294901760
          %v2982 = vsub.f32 %v2796, %v2981
          %v2983 = vand.u32 %v2982, 4294901760
          %2984 = vmatmul.f32.gmra.mxu0 %v2983
          %v2985 = vpop.f32.mrf.mxu0
          %v2986 = vadd.f32 %v2943, %v2985
          %v2987 = vand.u32 %v2799, 4294901760
          %v2988 = vsub.f32 %v2799, %v2987
          %v2989 = vand.u32 %v2988, 4294901760
          %2990 = vmatmul.f32.gmra.mxu0 %v2989
          %v2991 = vpop.f32.mrf.mxu0
          %v2992 = vadd.f32 %v2948, %v2991
          %v2993 = vand.u32 %v2802, 4294901760
          %v2994 = vsub.f32 %v2802, %v2993
          %v2995 = vand.u32 %v2994, 4294901760
          %2996 = vmatmul.f32.gmra.mxu0 %v2995
          %v2997 = vpop.f32.mrf.mxu0
          %v2998 = vadd.f32 %v2953, %v2997
          %2999 = vdwg.mxu0
          %3000 = vmatpush.msra.mxu0 0.0
          %3001 = vmatpush.msra.mxu0 0.0
          %3002 = vmatpush.msra.mxu0 0.0
          %3003 = vmatpush.msra.mxu0 0.0
          %3004 = vmatpush.msra.mxu0 0.0
          %3005 = vmatpush.msra.mxu0 0.0
          %3006 = vmatpush.msra.mxu0 0.0
          %3007 = vmatpush.msra.mxu0 0.0
          %3008 = vmatpush.msra.mxu0 0.0
          %3009 = vmatpush.msra.mxu0 0.0
          %3010 = vmatpush.msra.mxu0 0.0
          %3011 = vmatpush.msra.mxu0 0.0
          %v3012 = vand.u32 %v2762, 4294901760
          %v3013 = vsub.f32 %v2762, %v3012
          %v3014 = vand.u32 %v3013, 4294901760
          %3015 = vmatpush.msra.mxu0 %v3014
          %v3016 = vand.u32 %v2761, 4294901760
          %v3017 = vsub.f32 %v2761, %v3016
          %v3018 = vand.u32 %v3017, 4294901760
          %3019 = vmatpush.msra.mxu0 %v3018
          %v3020 = vand.u32 %v2760, 4294901760
          %v3021 = vsub.f32 %v2760, %v3020
          %v3022 = vand.u32 %v3021, 4294901760
          %3023 = vmatpush.msra.mxu0 %v3022
          %v3024 = vand.u32 %v2759, 4294901760
          %v3025 = vsub.f32 %v2759, %v3024
          %v3026 = vand.u32 %v3025, 4294901760
          %3027 = vmatpush.msra.mxu0 %v3026
          %v3028 = vand.u32 %v2793, 4294901760
          %3029 = vmatmul.f32.gmra.mxu0 %v3028
          %v3030 = vpop.f32.mrf.mxu0
          %v3031 = vadd.f32 %v2980, %v3030
          %v3032 = vand.u32 %v2796, 4294901760
          %3033 = vmatmul.f32.gmra.mxu0 %v3032
          %v3034 = vpop.f32.mrf.mxu0
          %v3035 = vadd.f32 %v2986, %v3034
          %v3036 = vand.u32 %v2799, 4294901760
          %3037 = vmatmul.f32.gmra.mxu0 %v3036
          %v3038 = vpop.f32.mrf.mxu0
          %v3039 = vadd.f32 %v2992, %v3038
          %v3040 = vand.u32 %v2802, 4294901760
          %3041 = vmatmul.f32.gmra.mxu0 %v3040
          %v3042 = vpop.f32.mrf.mxu0
          %v3043 = vadd.f32 %v2998, %v3042
          %3044 = vdwg.mxu0
          %3045 = vmatpush.msra.mxu0 0.0
          %3046 = vmatpush.msra.mxu0 0.0
          %3047 = vmatpush.msra.mxu0 0.0
          %3048 = vmatpush.msra.mxu0 0.0
          %3049 = vmatpush.msra.mxu0 0.0
          %3050 = vmatpush.msra.mxu0 0.0
          %3051 = vmatpush.msra.mxu0 0.0
          %3052 = vmatpush.msra.mxu0 0.0
          %3053 = vmatpush.msra.mxu0 0.0
          %3054 = vmatpush.msra.mxu0 0.0
          %3055 = vmatpush.msra.mxu0 0.0
          %3056 = vmatpush.msra.mxu0 0.0
          %v3057 = vand.u32 %v2762, 4294901760
          %3058 = vmatpush.msra.mxu0 %v3057
          %v3059 = vand.u32 %v2761, 4294901760
          %3060 = vmatpush.msra.mxu0 %v3059
          %v3061 = vand.u32 %v2760, 4294901760
          %3062 = vmatpush.msra.mxu0 %v3061
          %v3063 = vand.u32 %v2759, 4294901760
          %3064 = vmatpush.msra.mxu0 %v3063
          %v3065 = vand.u32 %v2793, 4294901760
          %3066 = vmatmul.f32.gmra.mxu0 %v3065
          %v3067 = vpop.f32.mrf.mxu0
          %v3068 = vadd.f32 %v3031, %v3067
          %v3069 = vand.u32 %v2796, 4294901760
          %3070 = vmatmul.f32.gmra.mxu0 %v3069
          %v3071 = vpop.f32.mrf.mxu0
          %v3072 = vadd.f32 %v3035, %v3071
          %v3073 = vand.u32 %v2799, 4294901760
          %3074 = vmatmul.f32.gmra.mxu0 %v3073
          %v3075 = vpop.f32.mrf.mxu0
          %v3076 = vadd.f32 %v3039, %v3075
          %v3077 = vand.u32 %v2802, 4294901760
          %3078 = vmatmul.f32.gmra.mxu0 %v3077
          %v3079 = vpop.f32.mrf.mxu0
          %v3080 = vadd.f32 %v3043, %v3079
          %3081 = vdwg.mxu0
          %3082 = vst [vmem:[%s281] sm:$0xff] %v3068
          %3083 = vst [vmem:[%s281 + $0x8] sm:$0xff] %v3072
          %3084 = vst [vmem:[%s281 + $0x10] sm:$0xff] %v3076
          %3085 = vst [vmem:[%s281 + $0x18] sm:$0xff] %v3080
        $region59: #{field_conv.1} parent=39 // pred_fallthru
          _
        %s3086 = sand.u32 %s176, 1
        %s3087 = scalar_lea.sflag [#allocation6], %s3086
        %s3088 = sand.u32 %s176, 1
        %s3089 = smul.addr %s3088, 32
        %s3090 = scalar_lea.vmem [#allocation5], %s3089
        // Predicated region
        $region60: #{field_conv.1} parent=39 // pred_check
          %p3091 = pneg %p186
        $region61: #{field_conv.1} parent=39 // pred_check_branch
          %3093 = sbr.rel (%p3091) target = $region63
        $region62: #{field_conv.1} parent=39 // pred_region
          %3095 = vsyncadd %s3087, 0
          %s3096 = smul.addr %s33, 8
          %s3097 = sadd.s32 %s34, %s3096
          %s3098 = smul.addr %s3097, 8
          %s3099 = scalar_lea.hbm %s6, %s3098
          %s3100 = sshll.u32 %s3090, 4
          %s3101 = int_to_ptr.vmem [resolvable:$true] %s3100
          %s3102 = sshll.u32 %s3099, 4
          %s3103 = int_to_ptr.hbm [resolvable:$true] %s3102
          %3108 = dma.vmem_to_hbm [thread:$0]  %s3101, 512, %s3103, %s3087, 128, 256, 8
        $region63: #{field_conv.1} parent=39 // pred_fallthru
          _
      $region40: #{field_conv.1} parent=5 // pred_fallthru
        _
      %p3109 = scmp.le.s32.totalorder 2, %s23
      // Predicated region
      $region64: #{field_conv.1} parent=5 // pred_check
        %p3110 = pneg %p3109
      $region65: #{field_conv.1} parent=5 // pred_check_branch
        %3112 = sbr.rel (%p3110) target = $region67
      $region66: #{field_conv.1} parent=5 // pred_region
        %s3113 = ssub.s32 %s23, 2
        // Predicated region
        $region68: #{field_conv.1} parent=66 // pred_check
          %p3114 = pneg %p192
        $region69: #{field_conv.1} parent=66 // pred_check_branch
          %3116 = sbr.rel (%p3114) target = $region71
        $region70: #{field_conv.1} parent=66 // pred_region
          %s3117 = sand.u32 %s177, 1
          %s3118 = scalar_lea.sflag [#allocation6], %s3117
          %s3119 = sand.u32 %s177, 1
          %s3120 = smul.addr %s3119, 32
          %s3121 = scalar_lea.vmem [#allocation5], %s3120
          %3123 = dma.done %s3118, 512
        $region71: #{field_conv.1} parent=66 // pred_fallthru
          _
      $region67: #{field_conv.1} parent=5 // pred_fallthru
        _
    $region6: #{field_conv.1} parent=1 // loop_footer
      %s27 = sadd.s32 1, %s23
    $region7: #{field_conv.1} parent=1 // loop_footer_branch
      %22 = sbr.rel target = $region3
    $region8: #{field_conv.1} parent=1 // loop_exit
      _
    %3124 = vsyncpa [#allocation6], 1
    %s3125 = scalar_lea.sflag [#allocation6], 1
    %3126 = vsyncpa %s3125, 1

</llo_original>
